<compile_context>
chip_gen: v7x
topology: tpu7x:2x2x1
jax: 0.10.0
libtpu: 0.0.40
codegen_flags: <defaults>
</compile_context>

<pallas_src>
import functools

import jax
import jax.numpy as jnp
from jax.experimental import pallas as pl
from jax.experimental.pallas import tpu as pltpu

LN_EPS = 1e-5  # torch.nn.LayerNorm default eps


def _round_up(x, m):
    return ((x + m - 1) // m) * m


def _layernorm_fast(h, gamma, beta):
    """LayerNorm with var = E[x^2] - mu^2 (one fewer (tile, H) pass)."""
    mu = jnp.mean(h, axis=-1, keepdims=True)
    var = jnp.mean(h * h, axis=-1, keepdims=True) - mu * mu
    var = jnp.maximum(var, 0.0)                     # cancellation guard
    return (h - mu) * jax.lax.rsqrt(var + LN_EPS) * gamma + beta


def bias_predictor_kernel(feat_ref, lat_ref, w1f_ref, w1l_ref, w2_ref,
                          p1_ref, p2_ref, out_ref):
    p1 = p1_ref[...]   # (3, H1): [b1; gamma1; beta1]
    p2 = p2_ref[...]   # (5, H2): [b2; gamma2; beta2; w3_row; b3 (broadcast)]

    # --- Layer 1: split-weight matmul == concat([feat, lat], dim=1) @ W1 ---
    h = jnp.dot(feat_ref[...], w1f_ref[...], preferred_element_type=jnp.float32)
    h = h + jnp.dot(lat_ref[...], w1l_ref[...], preferred_element_type=jnp.float32)
    h = h + p1[0:1, :]
    h = _layernorm_fast(h, p1[1:2, :], p1[2:3, :])
    h = jnp.maximum(h, 0.0)                       # ReLU (Dropout = identity in eval)

    # --- Layer 2 ---
    h = jnp.dot(h, w2_ref[...], preferred_element_type=jnp.float32) + p2[0:1, :]
    h = _layernorm_fast(h, p2[1:2, :], p2[2:3, :])
    h = jnp.maximum(h, 0.0)

    # --- Layer 3 (H2 -> 1): VPU multiply + lane reduction, no 1-col MXU matmul
    y = jnp.sum(h * p2[3:4, :], axis=-1, keepdims=True) + p2[4:5, 0:1]
    out_ref[...] = jax.nn.sigmoid(y).astype(out_ref.dtype)


def prepare_params(params, feat_dim):
    """One-time parameter repacking (hoisted out of the per-call path)."""
    h2 = params["w2"].shape[1]
    return dict(
        # Split W1 so the kernel never concatenates along lanes.
        w1f=params["w1"][:feat_dim, :],
        w1l=params["w1"][feat_dim:, :],
        w2=params["w2"],
        # Pack the small per-feature vectors: two DMAs instead of eight.
        p1=jnp.stack([params["b1"], params["g1"], params["be1"]], axis=0),
        p2=jnp.stack([params["b2"], params["g2"], params["be2"], params["w3"],
                      jnp.full((h2,), params["b3"], jnp.float32)], axis=0),
    )


@functools.partial(jax.jit, static_argnames=("row_tile",))
def bias_predictor_forward(constraint_features, constraint_latents, packed,
                           *, row_tile=4096):
    n, feat_dim = constraint_features.shape
    lat_dim = constraint_latents.shape[1]
    h1 = packed["w1f"].shape[1]
    h2 = packed["w2"].shape[1]

    # Tile choice: as large as row_tile, but capped so the parallel grid axis
    # has ~>=4 iterations (keeps both v7x TensorCores busy), and never below 8
    # sublanes.  No input padding: Pallas masks the partial last block.
    tile = max(8, min(_round_up(row_tile, 8), _round_up(pl.cdiv(n, 4), 8)))
    grid = (pl.cdiv(n, tile),)

    out = pl.pallas_call(
        bias_predictor_kernel,
        out_shape=jax.ShapeDtypeStruct((n, 1), jnp.float32),
        grid=grid,
        in_specs=[
            pl.BlockSpec((tile, feat_dim), lambda i: (i, 0)),   # row-blocked
            pl.BlockSpec((tile, lat_dim), lambda i: (i, 0)),    # row-blocked
            pl.BlockSpec((feat_dim, h1), lambda i: (0, 0)),     # resident weights
            pl.BlockSpec((lat_dim, h1), lambda i: (0, 0)),
            pl.BlockSpec((h1, h2), lambda i: (0, 0)),
            pl.BlockSpec((3, h1), lambda i: (0, 0)),
            pl.BlockSpec((5, h2), lambda i: (0, 0)),
        ],
        out_specs=pl.BlockSpec((tile, 1), lambda i: (i, 0)),
        compiler_params=pltpu.CompilerParams(
            dimension_semantics=("parallel",),    # row tiles are independent
            vmem_limit_bytes=32 * 1024 * 1024,
        ),
    )(constraint_features, constraint_latents,
      packed["w1f"], packed["w1l"], packed["w2"], packed["p1"], packed["p2"])
    return out


def init_params(key, input_dim, hidden_dim, hidden_dim2):
    """Deterministic synthetic parameters (shapes match the PyTorch module)."""
    ks = jax.random.split(key, 6)
    # Linear weights stored as [in, out] so the forward does x @ W
    w1 = jax.random.normal(ks[0], (input_dim, hidden_dim), jnp.float32) * 0.1
    b1 = jax.random.normal(ks[1], (hidden_dim,), jnp.float32) * 0.01
    w2 = jax.random.normal(ks[2], (hidden_dim, hidden_dim2), jnp.float32) * 0.1
    b2 = jax.random.normal(ks[3], (hidden_dim2,), jnp.float32) * 0.01
    w3 = jax.random.normal(ks[4], (hidden_dim2,), jnp.float32) * 0.1
    b3 = jax.random.normal(ks[5], (), jnp.float32) * 0.01
    # LayerNorm affine params (torch default init: gamma=1, beta=0)
    g1 = jnp.ones((hidden_dim,), jnp.float32)
    be1 = jnp.zeros((hidden_dim,), jnp.float32)
    g2 = jnp.ones((hidden_dim2,), jnp.float32)
    be2 = jnp.zeros((hidden_dim2,), jnp.float32)
    return dict(w1=w1, b1=b1, g1=g1, be1=be1,
                w2=w2, b2=b2, g2=g2, be2=be2,
                w3=w3, b3=b3)


def reference_forward(feat, lat, p):
    """Pure-JAX reference with the canonical two-pass LayerNorm."""
    def ln(h, gamma, beta):
        mu = jnp.mean(h, axis=-1, keepdims=True)
        var = jnp.mean((h - mu) * (h - mu), axis=-1, keepdims=True)
        return (h - mu) * jax.lax.rsqrt(var + LN_EPS) * gamma + beta

    x = jnp.concatenate([feat, lat], axis=1)
    h = x @ p["w1"] + p["b1"]
    h = jnp.maximum(ln(h, p["g1"], p["be1"]), 0.0)
    h = h @ p["w2"] + p["b2"]
    h = jnp.maximum(ln(h, p["g2"], p["be2"]), 0.0)
    return jax.nn.sigmoid(h @ p["w3"][:, None] + p["b3"])


if __name__ == "__main__":
    # Shapes consistent with the module defaults:
    #   constraint_features: [N, hidden_dim=128], constraint_latents: [N, latent_dim=64]
    #   input_dim = 128 + 64 = 192; predictor_hidden_dim = 64 -> 32 -> 1
    N, FEAT_DIM, LATENT_DIM = 300, 128, 64
    PRED_HIDDEN = 64
    PRED_HIDDEN2 = PRED_HIDDEN // 2

    key = jax.random.PRNGKey(0)
    k_feat, k_lat, k_par = jax.random.split(key, 3)
    constraint_features = jax.random.normal(k_feat, (N, FEAT_DIM), jnp.float32)
    constraint_latents = jax.random.normal(k_lat, (N, LATENT_DIM), jnp.float32)
    params = init_params(k_par, FEAT_DIM + LATENT_DIM, PRED_HIDDEN, PRED_HIDDEN2)

    # One-time repacking (split W1, stack the tiny LN/bias vectors).
    packed = prepare_params(params, FEAT_DIM)

    # N=300 with the min-4-steps cap -> tile=80, grid=4, partial last block of
    # 60 rows: exercises the unpadded cdiv path and masked writeback.
    out = bias_predictor_forward(constraint_features, constraint_latents, packed,
                                 row_tile=4096)
    out = jax.block_until_ready(out)

    ref = reference_forward(constraint_features, constraint_latents, params)
    assert out.shape == (N, 1)
    assert jnp.allclose(out, ref, atol=1e-4, rtol=1e-4)

    # denormalize_bias (glue outside the kernel hot path): bias_min=0, bias_max=1000
    bias_min, bias_max = 0.0, 1000.0
    real_bias = bias_min + out * (bias_max - bias_min)
    _ = jax.block_until_ready(real_bias)

    # TODO(synk): optional bf16 streaming of feat/lat (2x HBM bytes saved) only if
    # the upstream producer tolerates bf16 inputs numerically.
    print("KERNEL_OK")
</pallas_src>

<mosaic_0001>
module attributes {stable_mosaic.version = 11 : i64} {
  func.func @bias_predictor_kernel(%arg0: i32, %arg1: memref<80x128xf32, #tpu.memory_space<vmem>>, %arg2: memref<80x64xf32, #tpu.memory_space<vmem>>, %arg3: memref<128x64xf32, #tpu.memory_space<vmem>>, %arg4: memref<64x64xf32, #tpu.memory_space<vmem>>, %arg5: memref<64x32xf32, #tpu.memory_space<vmem>>, %arg6: memref<3x64xf32, #tpu.memory_space<vmem>>, %arg7: memref<5x32xf32, #tpu.memory_space<vmem>>, %arg8: memref<80x1xf32, #tpu.memory_space<vmem>>) attributes {dimension_semantics = [#tpu.dimension_semantics<parallel>], iteration_bounds = array<i64: 4>, scalar_prefetch = 0 : i64, scratch_operands = 0 : i64, tpu.core_type = #tpu.core_type<tc>, window_params = [{transform_indices = @transform_0, window_bounds = array<i64: 80, 128>}, {transform_indices = @transform_1, window_bounds = array<i64: 80, 64>}, {pipeline_mode = #tpu.pipeline_mode<synchronous>, transform_indices = @transform_2, window_bounds = array<i64: 128, 64>}, {pipeline_mode = #tpu.pipeline_mode<synchronous>, transform_indices = @transform_3, window_bounds = array<i64: 64, 64>}, {pipeline_mode = #tpu.pipeline_mode<synchronous>, transform_indices = @transform_4, window_bounds = array<i64: 64, 32>}, {pipeline_mode = #tpu.pipeline_mode<synchronous>, transform_indices = @transform_5, window_bounds = array<i64: 3, 64>}, {pipeline_mode = #tpu.pipeline_mode<synchronous>, transform_indices = @transform_6, window_bounds = array<i64: 5, 32>}, {transform_indices = @transform_7, window_bounds = array<i64: 80, 1>}]} {
    %c0 = arith.constant 0 : index
    %c0_0 = arith.constant 0 : index
    %0 = vector.load %arg6[%c0, %c0_0] : memref<3x64xf32, #tpu.memory_space<vmem>>, vector<3x64xf32>
    %c0_1 = arith.constant 0 : index
    %c0_2 = arith.constant 0 : index
    %1 = vector.load %arg7[%c0_1, %c0_2] : memref<5x32xf32, #tpu.memory_space<vmem>>, vector<5x32xf32>
    %c0_3 = arith.constant 0 : index
    %c0_4 = arith.constant 0 : index
    %2 = vector.load %arg1[%c0_3, %c0_4] : memref<80x128xf32, #tpu.memory_space<vmem>>, vector<80x128xf32>
    %c0_5 = arith.constant 0 : index
    %c0_6 = arith.constant 0 : index
    %3 = vector.load %arg3[%c0_5, %c0_6] : memref<128x64xf32, #tpu.memory_space<vmem>>, vector<128x64xf32>
    %cst = arith.constant dense<0.000000e+00> : vector<80x64xf32>
    %4 = tpu.matmul %2, %3, %cst {dimension_numbers = #tpu.dot_dimension_numbers<[1], [0], [0], [1], [0, 0, 1, 1], [], []>} : vector<80x128xf32>, vector<128x64xf32>, vector<80x64xf32> -> vector<80x64xf32>
    %c0_7 = arith.constant 0 : index
    %c0_8 = arith.constant 0 : index
    %5 = vector.load %arg2[%c0_7, %c0_8] : memref<80x64xf32, #tpu.memory_space<vmem>>, vector<80x64xf32>
    %c0_9 = arith.constant 0 : index
    %c0_10 = arith.constant 0 : index
    %6 = vector.load %arg4[%c0_9, %c0_10] : memref<64x64xf32, #tpu.memory_space<vmem>>, vector<64x64xf32>
    %cst_11 = arith.constant dense<0.000000e+00> : vector<80x64xf32>
    %7 = tpu.matmul %5, %6, %cst_11 {dimension_numbers = #tpu.dot_dimension_numbers<[1], [0], [0], [1], [0, 0, 1, 1], [], []>} : vector<80x64xf32>, vector<64x64xf32>, vector<80x64xf32> -> vector<80x64xf32>
    %8 = arith.addf %4, %7 : vector<80x64xf32>
    %9 = vector.extract_strided_slice %0 {offsets = [0, 0], sizes = [1, 64], strides = [1, 1]} : vector<3x64xf32> to vector<1x64xf32>
    %10 = vector.broadcast %9 : vector<1x64xf32> to vector<80x64xf32>
    %11 = arith.addf %8, %10 : vector<80x64xf32>
    %12 = vector.extract_strided_slice %0 {offsets = [1, 0], sizes = [1, 64], strides = [1, 1]} : vector<3x64xf32> to vector<1x64xf32>
    %13 = vector.extract_strided_slice %0 {offsets = [2, 0], sizes = [1, 64], strides = [1, 1]} : vector<3x64xf32> to vector<1x64xf32>
    %cst_12 = arith.constant dense<0.000000e+00> : vector<80xf32>
    %14 = vector.multi_reduction <add>, %11, %cst_12 [1] : vector<80x64xf32> to vector<80xf32>
    %15 = vector.shape_cast %14 : vector<80xf32> to vector<80x1xf32>
    %cst_13 = arith.constant 6.400000e+01 : f32
    %16 = vector.broadcast %cst_13 : f32 to vector<80x1xf32>
    %17 = arith.divf %15, %16 : vector<80x1xf32>
    %18 = arith.mulf %11, %11 : vector<80x64xf32>
    %cst_14 = arith.constant dense<0.000000e+00> : vector<80xf32>
    %19 = vector.multi_reduction <add>, %18, %cst_14 [1] : vector<80x64xf32> to vector<80xf32>
    %20 = vector.shape_cast %19 : vector<80xf32> to vector<80x1xf32>
    %cst_15 = arith.constant 6.400000e+01 : f32
    %21 = vector.broadcast %cst_15 : f32 to vector<80x1xf32>
    %22 = arith.divf %20, %21 : vector<80x1xf32>
    %23 = arith.mulf %17, %17 : vector<80x1xf32>
    %24 = arith.subf %22, %23 : vector<80x1xf32>
    %cst_16 = arith.constant 0.000000e+00 : f32
    %25 = vector.broadcast %cst_16 : f32 to vector<80x1xf32>
    %26 = arith.maximumf %24, %25 : vector<80x1xf32>
    %27 = vector.broadcast %17 : vector<80x1xf32> to vector<80x64xf32>
    %28 = arith.subf %11, %27 : vector<80x64xf32>
    %cst_17 = arith.constant 9.99999974E-6 : f32
    %29 = vector.broadcast %cst_17 : f32 to vector<80x1xf32>
    %30 = arith.addf %26, %29 : vector<80x1xf32>
    %31 = math.rsqrt %30 : vector<80x1xf32>
    %32 = vector.broadcast %31 : vector<80x1xf32> to vector<80x64xf32>
    %33 = arith.mulf %28, %32 : vector<80x64xf32>
    %34 = vector.broadcast %12 : vector<1x64xf32> to vector<80x64xf32>
    %35 = arith.mulf %33, %34 : vector<80x64xf32>
    %36 = vector.broadcast %13 : vector<1x64xf32> to vector<80x64xf32>
    %37 = arith.addf %35, %36 : vector<80x64xf32>
    %cst_18 = arith.constant 0.000000e+00 : f32
    %38 = vector.broadcast %cst_18 : f32 to vector<80x64xf32>
    %39 = arith.maximumf %37, %38 : vector<80x64xf32>
    %c0_19 = arith.constant 0 : index
    %c0_20 = arith.constant 0 : index
    %40 = vector.load %arg5[%c0_19, %c0_20] : memref<64x32xf32, #tpu.memory_space<vmem>>, vector<64x32xf32>
    %cst_21 = arith.constant dense<0.000000e+00> : vector<80x32xf32>
    %41 = tpu.matmul %39, %40, %cst_21 {dimension_numbers = #tpu.dot_dimension_numbers<[1], [0], [0], [1], [0, 0, 1, 1], [], []>} : vector<80x64xf32>, vector<64x32xf32>, vector<80x32xf32> -> vector<80x32xf32>
    %42 = vector.extract_strided_slice %1 {offsets = [0, 0], sizes = [1, 32], strides = [1, 1]} : vector<5x32xf32> to vector<1x32xf32>
    %43 = vector.broadcast %42 : vector<1x32xf32> to vector<80x32xf32>
    %44 = arith.addf %41, %43 : vector<80x32xf32>
    %45 = vector.extract_strided_slice %1 {offsets = [1, 0], sizes = [1, 32], strides = [1, 1]} : vector<5x32xf32> to vector<1x32xf32>
    %46 = vector.extract_strided_slice %1 {offsets = [2, 0], sizes = [1, 32], strides = [1, 1]} : vector<5x32xf32> to vector<1x32xf32>
    %cst_22 = arith.constant dense<0.000000e+00> : vector<80xf32>
    %47 = vector.multi_reduction <add>, %44, %cst_22 [1] : vector<80x32xf32> to vector<80xf32>
    %48 = vector.shape_cast %47 : vector<80xf32> to vector<80x1xf32>
    %cst_23 = arith.constant 3.200000e+01 : f32
    %49 = vector.broadcast %cst_23 : f32 to vector<80x1xf32>
    %50 = arith.divf %48, %49 : vector<80x1xf32>
    %51 = arith.mulf %44, %44 : vector<80x32xf32>
    %cst_24 = arith.constant dense<0.000000e+00> : vector<80xf32>
    %52 = vector.multi_reduction <add>, %51, %cst_24 [1] : vector<80x32xf32> to vector<80xf32>
    %53 = vector.shape_cast %52 : vector<80xf32> to vector<80x1xf32>
    %cst_25 = arith.constant 3.200000e+01 : f32
    %54 = vector.broadcast %cst_25 : f32 to vector<80x1xf32>
    %55 = arith.divf %53, %54 : vector<80x1xf32>
    %56 = arith.mulf %50, %50 : vector<80x1xf32>
    %57 = arith.subf %55, %56 : vector<80x1xf32>
    %cst_26 = arith.constant 0.000000e+00 : f32
    %58 = vector.broadcast %cst_26 : f32 to vector<80x1xf32>
    %59 = arith.maximumf %57, %58 : vector<80x1xf32>
    %60 = vector.broadcast %50 : vector<80x1xf32> to vector<80x32xf32>
    %61 = arith.subf %44, %60 : vector<80x32xf32>
    %cst_27 = arith.constant 9.99999974E-6 : f32
    %62 = vector.broadcast %cst_27 : f32 to vector<80x1xf32>
    %63 = arith.addf %59, %62 : vector<80x1xf32>
    %64 = math.rsqrt %63 : vector<80x1xf32>
    %65 = vector.broadcast %64 : vector<80x1xf32> to vector<80x32xf32>
    %66 = arith.mulf %61, %65 : vector<80x32xf32>
    %67 = vector.broadcast %45 : vector<1x32xf32> to vector<80x32xf32>
    %68 = arith.mulf %66, %67 : vector<80x32xf32>
    %69 = vector.broadcast %46 : vector<1x32xf32> to vector<80x32xf32>
    %70 = arith.addf %68, %69 : vector<80x32xf32>
    %cst_28 = arith.constant 0.000000e+00 : f32
    %71 = vector.broadcast %cst_28 : f32 to vector<80x32xf32>
    %72 = arith.maximumf %70, %71 : vector<80x32xf32>
    %73 = vector.extract_strided_slice %1 {offsets = [3, 0], sizes = [1, 32], strides = [1, 1]} : vector<5x32xf32> to vector<1x32xf32>
    %74 = vector.broadcast %73 : vector<1x32xf32> to vector<80x32xf32>
    %75 = arith.mulf %72, %74 : vector<80x32xf32>
    %cst_29 = arith.constant dense<0.000000e+00> : vector<80xf32>
    %76 = vector.multi_reduction <add>, %75, %cst_29 [1] : vector<80x32xf32> to vector<80xf32>
    %77 = vector.shape_cast %76 : vector<80xf32> to vector<80x1xf32>
    %78 = vector.extract_strided_slice %1 {offsets = [4, 0], sizes = [1, 1], strides = [1, 1]} : vector<5x32xf32> to vector<1x1xf32>
    %79 = vector.broadcast %78 : vector<1x1xf32> to vector<80x1xf32>
    %80 = arith.addf %77, %79 : vector<80x1xf32>
    %81 = arith.negf %80 : vector<80x1xf32>
    %82 = math.exp %81 : vector<80x1xf32>
    %cst_30 = arith.constant 1.000000e+00 : f32
    %83 = vector.broadcast %cst_30 : f32 to vector<80x1xf32>
    %84 = arith.addf %83, %82 : vector<80x1xf32>
    %85 = arith.divf %83, %84 : vector<80x1xf32>
    %c0_31 = arith.constant 0 : index
    %c0_32 = arith.constant 0 : index
    %86 = vector.load %arg8[%c0_31, %c0_32] : memref<80x1xf32, #tpu.memory_space<vmem>>, vector<80x1xf32>
    tpu.vector_store %arg8[%c0_31, %c0_32], %85 {strides = array<i32>} : memref<80x1xf32, #tpu.memory_space<vmem>>, vector<80x1xf32>,
    return
  }
  func.func @transform_0(%arg0: i32) -> (i32, i32) {
    %c0_i32 = arith.constant 0 : i32
    %c0_i32_0 = arith.constant 0 : i32
    return %arg0, %c0_i32 : i32, i32
  }
  func.func @transform_1(%arg0: i32) -> (i32, i32) {
    %c0_i32 = arith.constant 0 : i32
    %c0_i32_0 = arith.constant 0 : i32
    return %arg0, %c0_i32 : i32, i32
  }
  func.func @transform_2(%arg0: i32) -> (i32, i32) {
    %c0_i32 = arith.constant 0 : i32
    %c0_i32_0 = arith.constant 0 : i32
    %c0_i32_1 = arith.constant 0 : i32
    return %c0_i32, %c0_i32_0 : i32, i32
  }
  func.func @transform_3(%arg0: i32) -> (i32, i32) {
    %c0_i32 = arith.constant 0 : i32
    %c0_i32_0 = arith.constant 0 : i32
    %c0_i32_1 = arith.constant 0 : i32
    return %c0_i32, %c0_i32_0 : i32, i32
  }
  func.func @transform_4(%arg0: i32) -> (i32, i32) {
    %c0_i32 = arith.constant 0 : i32
    %c0_i32_0 = arith.constant 0 : i32
    %c0_i32_1 = arith.constant 0 : i32
    return %c0_i32, %c0_i32_0 : i32, i32
  }
  func.func @transform_5(%arg0: i32) -> (i32, i32) {
    %c0_i32 = arith.constant 0 : i32
    %c0_i32_0 = arith.constant 0 : i32
    %c0_i32_1 = arith.constant 0 : i32
    return %c0_i32, %c0_i32_0 : i32, i32
  }
  func.func @transform_6(%arg0: i32) -> (i32, i32) {
    %c0_i32 = arith.constant 0 : i32
    %c0_i32_0 = arith.constant 0 : i32
    %c0_i32_1 = arith.constant 0 : i32
    return %c0_i32, %c0_i32_0 : i32, i32
  }
  func.func @transform_7(%arg0: i32) -> (i32, i32) {
    %c0_i32 = arith.constant 0 : i32
    %c0_i32_0 = arith.constant 0 : i32
    return %arg0, %c0_i32 : i32, i32
  }
}

</mosaic_0001>

<llo_original>
// kernel: bias_predictor_forward.1
$region0: #{bias_predictor_forward.1}
  #allocation0 [shape = 'u32[]', space=smem, size = 0x4, offset = 0x4, fixed_abs, tag = 'smem constant byte address 0x4 - core index']
  #allocation1 [shape = 'u32[144,128]{1,0:T(1,128)}', space=vmem, size = 0x12000, scoped, tag = 'internal scratch']
  %s0 = inlined_call_operand.vmem [shape: f32[300,128], index: 0, kind: input, shape index: {}]
  %s1 = inlined_call_operand.vmem [shape: f32[300,64], index: 1, kind: input, shape index: {}]
  %s2 = inlined_call_operand.vmem [shape: f32[128,64], index: 2, kind: input, shape index: {}]
  %s3 = inlined_call_operand.vmem [shape: f32[64,64], index: 3, kind: input, shape index: {}]
  %s4 = inlined_call_operand.vmem [shape: f32[64,32], index: 4, kind: input, shape index: {}]
  %s5 = inlined_call_operand.vmem [shape: f32[3,64], index: 5, kind: input, shape index: {}]
  %s6 = inlined_call_operand.vmem [shape: f32[5,32], index: 6, kind: input, shape index: {}]
  %s7 = inlined_call_operand.vmem [shape: f32[300,1], index: 7, kind: output, shape index: {}]
  %s8 = sld [smem:[#allocation0]]
  $region109: #{bias_predictor_forward.1} parent=0
    _
  %s10 = ssub.s32 1, %s8
  %s11 = scalar_select 0, %s10, %s8
  $region1: #{bias_predictor_forward.1} parent=0
    #allocation2 [shape = 'u8[81920]{0}', space=vmem, size = 0x14000, scoped, tag = 'output window, operand 0']
    loop: start=0, step=1, limit=6
    $region2: #{bias_predictor_forward.1} parent=1 // loop_pre_header
      _
    $region3: #{bias_predictor_forward.1} parent=1 // loop_header
      %s13 = sphi 0, %s17
      %p14 = scmp.ge.s32.totalorder %s13, 6
      %s23 = sphi 0, %s25
      %s26 = sphi 0, %s23
      %s27 = sphi 0, %s26
      %s43 = sphi 0, %s27
      %s49 = sphi 0, %s51
      %s52 = sphi 0, %s49
      %s53 = sphi 0, %s52
      %s69 = sphi 0, %s53
      %s73 = sphi 0, %s73
      %s75 = sphi 0, %s73
      %s76 = sphi 0, %s75
      %s90 = sphi 0, %s76
      %s94 = sphi 0, %s94
      %s96 = sphi 0, %s94
      %s97 = sphi 0, %s96
      %s111 = sphi 0, %s97
      %s115 = sphi 0, %s115
      %s117 = sphi 0, %s115
      %s118 = sphi 0, %s117
      %s132 = sphi 0, %s118
      %s136 = sphi 0, %s136
      %s138 = sphi 0, %s136
      %s139 = sphi 0, %s138
      %s153 = sphi 0, %s139
      %s157 = sphi 0, %s157
      %s159 = sphi 0, %s157
      %s160 = sphi 0, %s159
      %s174 = sphi 0, %s160
      %s180 = sphi 0, %s182
      %s183 = sphi 0, %s180
      %s184 = sphi 0, %s183
      %s200 = sphi 0, %s184
    $region4: #{bias_predictor_forward.1} parent=1 // loop_header_branch
      %16 = sbr.rel (%p14) target = $region8
    $region5: #{bias_predictor_forward.1} parent=1 // loop_body
      %s18 = ssub.s32 %s13, 1
      %s19 = ssub.s32 %s13, 2
      %s20 = sadd.s32 %s13, 1
      %s21 = ssub.s32 %s13, %s20
      %p22 = scmp.eq.s32.totalorder %s21, 0
      %s24 = sadd.s32 %s23, 1
      %s25 = scalar_select %p22, %s23, %s24
      %p28 = pneg %p22
      %p29 = scmp.eq.s32.totalorder %s13, 3
      %p30 = por %p28, %p29
      %p31 = scmp.ne.s32.totalorder %s23, %s26
      %p32 = scmp.eq.s32.totalorder %s13, 0
      %p33 = por %p31, %p32
      %p34 = scmp.ne.s32.totalorder %s23, %s26
      %p35 = scmp.eq.s32.totalorder %s18, 3
      %p36 = por %p34, %p35
      %p37 = scmp.ne.s32.totalorder %s26, %s27
      %p38 = scmp.eq.s32.totalorder %s18, 0
      %p39 = por %p37, %p38
      %p40 = scmp.ne.s32.totalorder %s26, %s27
      %p41 = scmp.eq.s32.totalorder %s19, 3
      %p42 = por %p40, %p41
      %p44 = scmp.ne.s32.totalorder %s27, %s43
      %p45 = scmp.eq.s32.totalorder %s19, 0
      %p46 = por %p44, %p45
      %s47 = ssub.s32 %s13, %s20
      %p48 = scmp.eq.s32.totalorder %s47, 0
      %s50 = sadd.s32 %s49, 1
      %s51 = scalar_select %p48, %s49, %s50
      %p54 = pneg %p48
      %p55 = scmp.eq.s32.totalorder %s13, 3
      %p56 = por %p54, %p55
      %p57 = scmp.ne.s32.totalorder %s49, %s52
      %p58 = scmp.eq.s32.totalorder %s13, 0
      %p59 = por %p57, %p58
      %p60 = scmp.ne.s32.totalorder %s49, %s52
      %p61 = scmp.eq.s32.totalorder %s18, 3
      %p62 = por %p60, %p61
      %p63 = scmp.ne.s32.totalorder %s52, %s53
      %p64 = scmp.eq.s32.totalorder %s18, 0
      %p65 = por %p63, %p64
      %p66 = scmp.ne.s32.totalorder %s52, %s53
      %p67 = scmp.eq.s32.totalorder %s19, 3
      %p68 = por %p66, %p67
      %p70 = scmp.ne.s32.totalorder %s53, %s69
      %p71 = scmp.eq.s32.totalorder %s19, 0
      %p72 = por %p70, %p71
      %s74 = sadd.s32 %s73, 1
      %p77 = scmp.eq.s32.totalorder %s13, 3
      %p78 = scmp.ne.s32.totalorder %s73, %s75
      %p79 = scmp.eq.s32.totalorder %s13, 0
      %p80 = por %p78, %p79
      %p81 = scmp.ne.s32.totalorder %s73, %s75
      %p82 = scmp.eq.s32.totalorder %s18, 3
      %p83 = por %p81, %p82
      %p84 = scmp.ne.s32.totalorder %s75, %s76
      %p85 = scmp.eq.s32.totalorder %s18, 0
      %p86 = por %p84, %p85
      %p87 = scmp.ne.s32.totalorder %s75, %s76
      %p88 = scmp.eq.s32.totalorder %s19, 3
      %p89 = por %p87, %p88
      %p91 = scmp.ne.s32.totalorder %s76, %s90
      %p92 = scmp.eq.s32.totalorder %s19, 0
      %p93 = por %p91, %p92
      %s95 = sadd.s32 %s94, 1
      %p98 = scmp.eq.s32.totalorder %s13, 3
      %p99 = scmp.ne.s32.totalorder %s94, %s96
      %p100 = scmp.eq.s32.totalorder %s13, 0
      %p101 = por %p99, %p100
      %p102 = scmp.ne.s32.totalorder %s94, %s96
      %p103 = scmp.eq.s32.totalorder %s18, 3
      %p104 = por %p102, %p103
      %p105 = scmp.ne.s32.totalorder %s96, %s97
      %p106 = scmp.eq.s32.totalorder %s18, 0
      %p107 = por %p105, %p106
      %p108 = scmp.ne.s32.totalorder %s96, %s97
      %p109 = scmp.eq.s32.totalorder %s19, 3
      %p110 = por %p108, %p109
      %p112 = scmp.ne.s32.totalorder %s97, %s111
      %p113 = scmp.eq.s32.totalorder %s19, 0
      %p114 = por %p112, %p113
      %s116 = sadd.s32 %s115, 1
      %p119 = scmp.eq.s32.totalorder %s13, 3
      %p120 = scmp.ne.s32.totalorder %s115, %s117
      %p121 = scmp.eq.s32.totalorder %s13, 0
      %p122 = por %p120, %p121
      %p123 = scmp.ne.s32.totalorder %s115, %s117
      %p124 = scmp.eq.s32.totalorder %s18, 3
      %p125 = por %p123, %p124
      %p126 = scmp.ne.s32.totalorder %s117, %s118
      %p127 = scmp.eq.s32.totalorder %s18, 0
      %p128 = por %p126, %p127
      %p129 = scmp.ne.s32.totalorder %s117, %s118
      %p130 = scmp.eq.s32.totalorder %s19, 3
      %p131 = por %p129, %p130
      %p133 = scmp.ne.s32.totalorder %s118, %s132
      %p134 = scmp.eq.s32.totalorder %s19, 0
      %p135 = por %p133, %p134
      %s137 = sadd.s32 %s136, 1
      %p140 = scmp.eq.s32.totalorder %s13, 3
      %p141 = scmp.ne.s32.totalorder %s136, %s138
      %p142 = scmp.eq.s32.totalorder %s13, 0
      %p143 = por %p141, %p142
      %p144 = scmp.ne.s32.totalorder %s136, %s138
      %p145 = scmp.eq.s32.totalorder %s18, 3
      %p146 = por %p144, %p145
      %p147 = scmp.ne.s32.totalorder %s138, %s139
      %p148 = scmp.eq.s32.totalorder %s18, 0
      %p149 = por %p147, %p148
      %p150 = scmp.ne.s32.totalorder %s138, %s139
      %p151 = scmp.eq.s32.totalorder %s19, 3
      %p152 = por %p150, %p151
      %p154 = scmp.ne.s32.totalorder %s139, %s153
      %p155 = scmp.eq.s32.totalorder %s19, 0
      %p156 = por %p154, %p155
      %s158 = sadd.s32 %s157, 1
      %p161 = scmp.eq.s32.totalorder %s13, 3
      %p162 = scmp.ne.s32.totalorder %s157, %s159
      %p163 = scmp.eq.s32.totalorder %s13, 0
      %p164 = por %p162, %p163
      %p165 = scmp.ne.s32.totalorder %s157, %s159
      %p166 = scmp.eq.s32.totalorder %s18, 3
      %p167 = por %p165, %p166
      %p168 = scmp.ne.s32.totalorder %s159, %s160
      %p169 = scmp.eq.s32.totalorder %s18, 0
      %p170 = por %p168, %p169
      %p171 = scmp.ne.s32.totalorder %s159, %s160
      %p172 = scmp.eq.s32.totalorder %s19, 3
      %p173 = por %p171, %p172
      %p175 = scmp.ne.s32.totalorder %s160, %s174
      %p176 = scmp.eq.s32.totalorder %s19, 0
      %p177 = por %p175, %p176
      %s178 = ssub.s32 %s13, %s20
      %p179 = scmp.eq.s32.totalorder %s178, 0
      %s181 = sadd.s32 %s180, 1
      %s182 = scalar_select %p179, %s180, %s181
      %p185 = pneg %p179
      %p186 = scmp.eq.s32.totalorder %s13, 3
      %p187 = por %p185, %p186
      %p188 = scmp.ne.s32.totalorder %s180, %s183
      %p189 = scmp.eq.s32.totalorder %s13, 0
      %p190 = por %p188, %p189
      %p191 = scmp.ne.s32.totalorder %s180, %s183
      %p192 = scmp.eq.s32.totalorder %s18, 3
      %p193 = por %p191, %p192
      %p194 = scmp.ne.s32.totalorder %s183, %s184
      %p195 = scmp.eq.s32.totalorder %s18, 0
      %p196 = por %p194, %p195
      %p197 = scmp.ne.s32.totalorder %s183, %s184
      %p198 = scmp.eq.s32.totalorder %s19, 3
      %p199 = por %p197, %p198
      %p201 = scmp.ne.s32.totalorder %s184, %s200
      %p202 = scmp.eq.s32.totalorder %s19, 0
      %p203 = por %p201, %p202
      %p204 = scmp.le.s32.totalorder 1, %s13
      %p205 = scmp.lt.s32.totalorder %s13, 5
      %p206 = pnand %p204, %p205
      %p207 = pneg %p206
      // Predicated region
      $region9: #{bias_predictor_forward.1} parent=5 // pred_check
        _
      $region10: #{bias_predictor_forward.1} parent=5 // pred_check_branch
        %209 = sbr.rel (%p206) target = $region12
      $region11: #{bias_predictor_forward.1} parent=5 // pred_region
        %s210 = ssub.s32 %s13, 1
        // Predicated region
        $region13: #{bias_predictor_forward.1} parent=11 // pred_check
          %p211 = pneg %p86
        $region14: #{bias_predictor_forward.1} parent=11 // pred_check_branch
          %213 = sbr.rel (%p211) target = $region16
        $region15: #{bias_predictor_forward.1} parent=11 // pred_region
          _
        $region16: #{bias_predictor_forward.1} parent=11 // pred_fallthru
          _
        // Predicated region
        $region17: #{bias_predictor_forward.1} parent=11 // pred_check
          %p214 = pneg %p107
        $region18: #{bias_predictor_forward.1} parent=11 // pred_check_branch
          %216 = sbr.rel (%p214) target = $region20
        $region19: #{bias_predictor_forward.1} parent=11 // pred_region
          _
        $region20: #{bias_predictor_forward.1} parent=11 // pred_fallthru
          _
        // Predicated region
        $region21: #{bias_predictor_forward.1} parent=11 // pred_check
          %p217 = pneg %p128
        $region22: #{bias_predictor_forward.1} parent=11 // pred_check_branch
          %219 = sbr.rel (%p217) target = $region24
        $region23: #{bias_predictor_forward.1} parent=11 // pred_region
          _
        $region24: #{bias_predictor_forward.1} parent=11 // pred_fallthru
          _
        // Predicated region
        $region25: #{bias_predictor_forward.1} parent=11 // pred_check
          %p220 = pneg %p149
        $region26: #{bias_predictor_forward.1} parent=11 // pred_check_branch
          %222 = sbr.rel (%p220) target = $region28
        $region27: #{bias_predictor_forward.1} parent=11 // pred_region
          _
        $region28: #{bias_predictor_forward.1} parent=11 // pred_fallthru
          _
        // Predicated region
        $region29: #{bias_predictor_forward.1} parent=11 // pred_check
          %p223 = pneg %p170
        $region30: #{bias_predictor_forward.1} parent=11 // pred_check_branch
          %225 = sbr.rel (%p223) target = $region32
        $region31: #{bias_predictor_forward.1} parent=11 // pred_region
          _
        $region32: #{bias_predictor_forward.1} parent=11 // pred_fallthru
          _
      $region12: #{bias_predictor_forward.1} parent=5 // pred_fallthru
        _
      %p226 = scmp.lt.s32.totalorder %s13, 4
      // Predicated region
      $region33: #{bias_predictor_forward.1} parent=5 // pred_check
        %p227 = pneg %p226
      $region34: #{bias_predictor_forward.1} parent=5 // pred_check_branch
        %229 = sbr.rel (%p227) target = $region36
      $region35: #{bias_predictor_forward.1} parent=5 // pred_region
        // Predicated region
        $region37: #{bias_predictor_forward.1} parent=35 // pred_check
          %p230 = pneg %p33
        $region38: #{bias_predictor_forward.1} parent=35 // pred_check_branch
          %232 = sbr.rel (%p230) target = $region40
        $region39: #{bias_predictor_forward.1} parent=35 // pred_region
          %s233 = smul.u32 10, %s13
          %s234 = ssub.s32 38, %s233
          %p235 = scmp.lt.s32.totalorder %s234, 10
          %s236 = scalar_select %p235, %s234, 10
          %s237 = smul.u32 128, %s236
          %p238 = scmp.lt.s32.totalorder %s233, 37
          %s239 = scalar_select %p238, %s233, 37
          %s240 = smul.addr %s239, 8
          %s241 = scalar_lea.vmem %s0, %s240
          %s242 = smul.u32 10, %s13
          %s243 = ssub.s32 38, %s242
          %p244 = scmp.lt.s32.totalorder %s243, 10
          %s245 = scalar_select %p244, %s243, 10
          %s246 = smul.u32 128, %s245
        $region40: #{bias_predictor_forward.1} parent=35 // pred_fallthru
          _
        // Predicated region
        $region41: #{bias_predictor_forward.1} parent=35 // pred_check
          %p247 = pneg %p59
        $region42: #{bias_predictor_forward.1} parent=35 // pred_check_branch
          %249 = sbr.rel (%p247) target = $region44
        $region43: #{bias_predictor_forward.1} parent=35 // pred_region
          %s250 = smul.u32 10, %s13
          %s251 = ssub.s32 38, %s250
          %p252 = scmp.lt.s32.totalorder %s251, 10
          %s253 = scalar_select %p252, %s251, 10
          %s254 = smul.u32 128, %s253
          %p255 = scmp.lt.s32.totalorder %s250, 37
          %s256 = scalar_select %p255, %s250, 37
          %s257 = smul.addr %s256, 8
          %s258 = scalar_lea.vmem %s1, %s257
          %s259 = smul.u32 10, %s13
          %s260 = ssub.s32 38, %s259
          %p261 = scmp.lt.s32.totalorder %s260, 10
          %s262 = scalar_select %p261, %s260, 10
          %s263 = smul.u32 128, %s262
        $region44: #{bias_predictor_forward.1} parent=35 // pred_fallthru
          _
      $region36: #{bias_predictor_forward.1} parent=5 // pred_fallthru
        _
      %p264 = scmp.le.s32.totalorder 1, %s13
      %p265 = scmp.lt.s32.totalorder %s13, 5
      %p266 = pnand %p264, %p265
      %p267 = pneg %p266
      // Predicated region
      $region45: #{bias_predictor_forward.1} parent=5 // pred_check
        _
      $region46: #{bias_predictor_forward.1} parent=5 // pred_check_branch
        %269 = sbr.rel (%p266) target = $region48
      $region47: #{bias_predictor_forward.1} parent=5 // pred_region
        %s270 = ssub.s32 %s13, 1
        %s271 = smul.u32 10, %s18
        %s272 = ssub.s32 38, %s271
        %p273 = scmp.lt.s32.totalorder %s272, 10
        %s274 = scalar_select %p273, %s272, 10
        %s275 = smul.u32 128, %s274
        %p276 = scmp.lt.s32.totalorder %s271, 37
        %s277 = scalar_select %p276, %s271, 37
        %s278 = smul.addr %s277, 8
        %s279 = scalar_lea.vmem %s0, %s278
        %p280 = pneg %p39
        %p281 = pneg %p36
        %s282 = smul.u32 10, %s18
        %s283 = ssub.s32 38, %s282
        %p284 = scmp.lt.s32.totalorder %s283, 10
        %s285 = scalar_select %p284, %s283, 10
        %s286 = smul.u32 128, %s285
        %p287 = scmp.lt.s32.totalorder %s282, 37
        %s288 = scalar_select %p287, %s282, 37
        %s289 = smul.addr %s288, 8
        %s290 = scalar_lea.vmem %s1, %s289
        %p291 = pneg %p65
        %p292 = pneg %p62
        %p293 = pneg %p86
        %p294 = pneg %p83
        %p295 = pneg %p107
        %p296 = pneg %p104
        %p297 = pneg %p128
        %p298 = pneg %p125
        %p299 = pneg %p149
        %p300 = pneg %p146
        %p301 = pneg %p170
        %p302 = pneg %p167
        %p303 = pneg %p196
        %p304 = pneg %p193
        %s305 = sand.u32 %s183, 1
        %s306 = sand.u32 %s183, 1
        %s307 = smul.addr %s306, 80
        %s308 = scalar_lea.vmem [#allocation2], %s307
        %s309 = smul.u32 10, %s18
        %s310 = ssub.s32 38, %s309
        %p311 = scmp.lt.s32.totalorder %s310, 10
        %s312 = scalar_select %p311, %s310, 10
        %s313 = smul.u32 128, %s312
        %p314 = scmp.lt.s32.totalorder %s309, 37
        %s315 = scalar_select %p314, %s309, 37
        %s316 = smul.addr %s315, 8
        %s317 = scalar_lea.vmem %s0, %s316
        %s318 = smul.u32 10, %s18
        %s319 = ssub.s32 38, %s318
        %p320 = scmp.lt.s32.totalorder %s319, 10
        %s321 = scalar_select %p320, %s319, 10
        %s322 = smul.u32 128, %s321
        %s323 = smul.u32 10, %s18
        %s324 = ssub.s32 38, %s323
        %p325 = scmp.lt.s32.totalorder %s324, 10
        %s326 = scalar_select %p325, %s324, 10
        %s327 = smul.u32 128, %s326
        %p328 = scmp.lt.s32.totalorder %s323, 37
        %s329 = scalar_select %p328, %s323, 37
        %s330 = smul.addr %s329, 8
        %s331 = scalar_lea.vmem %s1, %s330
        %s332 = smul.u32 10, %s18
        %s333 = ssub.s32 38, %s332
        %p334 = scmp.lt.s32.totalorder %s333, 10
        %s335 = scalar_select %p334, %s333, 10
        %s336 = smul.u32 128, %s335
        %s337 = smul.u32 10, %s18
        %s338 = ssub.s32 38, %s337
        %p339 = scmp.lt.s32.totalorder %s338, 10
        %s340 = scalar_select %p339, %s338, 10
        %s341 = smul.u32 128, %s340
        %v342 = vld [vmem:[%s5] sm:$0x7]
        %v343 = vld [vmem:[%s6] sm:$0x1f]
        %v344 = vld [vmem:[%s317] sm:$0xff]
        %v345 = vld [vmem:[%s317 + $0x8] sm:$0xff]
        %v346 = vld [vmem:[%s317 + $0x10] sm:$0xff]
        %v347 = vld [vmem:[%s317 + $0x18] sm:$0xff]
        %v348 = vld [vmem:[%s317 + $0x20] sm:$0xff]
        %v349 = vld [vmem:[%s317 + $0x28] sm:$0xff]
        %v350 = vld [vmem:[%s317 + $0x30] sm:$0xff]
        %v351 = vld [vmem:[%s317 + $0x38] sm:$0xff]
        %v352 = vld [vmem:[%s317 + $0x40] sm:$0xff]
        %v353 = vld [vmem:[%s317 + $0x48] sm:$0xff]
        %v354 = vld [vmem:[%s2] sm:$0xff]
        %v355 = vld [vmem:[%s2 + $0x8] sm:$0xff]
        %v356 = vld [vmem:[%s2 + $0x10] sm:$0xff]
        %v357 = vld [vmem:[%s2 + $0x18] sm:$0xff]
        %v358 = vld [vmem:[%s2 + $0x20] sm:$0xff]
        %v359 = vld [vmem:[%s2 + $0x28] sm:$0xff]
        %v360 = vld [vmem:[%s2 + $0x30] sm:$0xff]
        %v361 = vld [vmem:[%s2 + $0x38] sm:$0xff]
        %v362 = vld [vmem:[%s2 + $0x40] sm:$0xff]
        %v363 = vld [vmem:[%s2 + $0x48] sm:$0xff]
        %v364 = vld [vmem:[%s2 + $0x50] sm:$0xff]
        %v365 = vld [vmem:[%s2 + $0x58] sm:$0xff]
        %v366 = vld [vmem:[%s2 + $0x60] sm:$0xff]
        %v367 = vld [vmem:[%s2 + $0x68] sm:$0xff]
        %v368 = vld [vmem:[%s2 + $0x70] sm:$0xff]
        %v369 = vld [vmem:[%s2 + $0x78] sm:$0xff]
        %v370 = vld [vmem:[%s331] sm:$0xff]
        %v371 = vld [vmem:[%s331 + $0x8] sm:$0xff]
        %v372 = vld [vmem:[%s331 + $0x10] sm:$0xff]
        %v373 = vld [vmem:[%s331 + $0x18] sm:$0xff]
        %v374 = vld [vmem:[%s331 + $0x20] sm:$0xff]
        %v375 = vld [vmem:[%s331 + $0x28] sm:$0xff]
        %v376 = vld [vmem:[%s331 + $0x30] sm:$0xff]
        %v377 = vld [vmem:[%s331 + $0x38] sm:$0xff]
        %v378 = vld [vmem:[%s331 + $0x40] sm:$0xff]
        %v379 = vld [vmem:[%s331 + $0x48] sm:$0xff]
        %v380 = vld [vmem:[%s3] sm:$0xff]
        %v381 = vld [vmem:[%s3 + $0x8] sm:$0xff]
        %v382 = vld [vmem:[%s3 + $0x10] sm:$0xff]
        %v383 = vld [vmem:[%s3 + $0x18] sm:$0xff]
        %v384 = vld [vmem:[%s3 + $0x20] sm:$0xff]
        %v385 = vld [vmem:[%s3 + $0x28] sm:$0xff]
        %v386 = vld [vmem:[%s3 + $0x30] sm:$0xff]
        %v387 = vld [vmem:[%s3 + $0x38] sm:$0xff]
        %vm388 = vcmask 523264
        %v390 = vsel %vm388, %v370, 0
        %v393 = vsel %vm388, %v371, 0
        %v396 = vsel %vm388, %v372, 0
        %v399 = vsel %vm388, %v373, 0
        %v402 = vsel %vm388, %v374, 0
        %v405 = vsel %vm388, %v375, 0
        %v408 = vsel %vm388, %v376, 0
        %v411 = vsel %vm388, %v377, 0
        %v414 = vsel %vm388, %v378, 0
        %v417 = vsel %vm388, %v379, 0
        %419 = vmatprep.subr.mxu0 0.0
        %420 = vmatpush1.msra.mxu0 %v380
        %421 = vmatprep.subr.mxu0 0.0
        %422 = vmatpush1.msra.mxu0 %v381
        %423 = vmatprep.subr.mxu0 0.0
        %424 = vmatpush1.msra.mxu0 %v382
        %425 = vmatprep.subr.mxu0 0.0
        %426 = vmatpush1.msra.mxu0 %v383
        %427 = vmatprep.subr.mxu0 0.0
        %428 = vmatpush1.msra.mxu0 %v384
        %429 = vmatprep.subr.mxu0 0.0
        %430 = vmatpush1.msra.mxu0 %v385
        %431 = vmatprep.subr.mxu0 0.0
        %432 = vmatpush1.msra.mxu0 %v386
        %433 = vmatprep.subr.mxu0 0.0
        %434 = vmatpush1.msra.mxu0 %v387
        %435 = vmatprep.subr.mxu0 0.0
        %436 = vmatpush1.msra.mxu0 0.0
        %437 = vmatprep.subr.mxu0 0.0
        %438 = vmatpush1.msra.mxu0 0.0
        %439 = vmatprep.subr.mxu0 0.0
        %440 = vmatpush1.msra.mxu0 0.0
        %441 = vmatprep.subr.mxu0 0.0
        %442 = vmatpush1.msra.mxu0 0.0
        %443 = vmatprep.subr.mxu0 0.0
        %444 = vmatpush1.msra.mxu0 0.0
        %445 = vmatprep.subr.mxu0 0.0
        %446 = vmatpush1.msra.mxu0 0.0
        %447 = vmatprep.subr.mxu0 0.0
        %448 = vmatpush1.msra.mxu0 0.0
        %449 = vmatprep.subr.mxu0 0.0
        %450 = vmatpush1.msra.mxu0 0.0
        %451 = vmatprep.subr.mxu0 0.0
        %452 = vmatpush1.msra.mxu0 0.0
        %453 = vmatprep.subr.mxu0 0.0
        %454 = vmatpush1.msra.mxu0 0.0
        %455 = vmatprep.subr.mxu0 0.0
        %456 = vmatpush1.msra.mxu0 0.0
        %457 = vmatprep.subr.mxu0 0.0
        %458 = vmatpush1.msra.mxu0 0.0
        %459 = vmatprep.subr.mxu0 0.0
        %460 = vmatpush1.msra.mxu0 0.0
        %461 = vmatprep.subr.mxu0 0.0
        %462 = vmatpush1.msra.mxu0 0.0
        %463 = vmatprep.subr.mxu0 0.0
        %464 = vmatpush1.msra.mxu0 0.0
        %465 = vmatprep.subr.mxu0 0.0
        %466 = vmatpush1.msra.mxu0 0.0
        %467 = vmatprep.subr.mxu0 0.0
        %468 = vmatpush1.msra.mxu0 0.0
        %469 = vmatprep.subr.mxu0 0.0
        %470 = vmatpush1.msra.mxu0 0.0
        %471 = vmatprep.subr.mxu0 0.0
        %472 = vmatpush1.msra.mxu0 0.0
        %473 = vmatprep.subr.mxu0 0.0
        %474 = vmatpush1.msra.mxu0 0.0
        %475 = vmatprep.subr.mxu0 0.0
        %476 = vmatpush1.msra.mxu0 0.0
        %477 = vmatprep.subr.mxu0 0.0
        %478 = vmatpush1.msra.mxu0 0.0
        %479 = vmatprep.subr.mxu0 0.0
        %480 = vmatpush1.msra.mxu0 0.0
        %481 = vmatprep.subr.mxu0 0.0
        %482 = vmatpush1.msra.mxu0 0.0
        %483 = vmatprep.mubr.f32.mxu0 0.0
        %484 = vmatmul.mubr.f32.gmra.mrb[0].mxu0 %v390
        %v485 = vpop.f32.mrb[0].mxu0
        %v486 = vadd.f32 0.0, %v485
        %v487 = vpop.f32.mrb[0].mxu0
        %488 = vmatprep.mubr.f32.mxu0 0.0
        %489 = vmatmul.mubr.f32.gmra.mrb[0].mxu0 %v393
        %v490 = vpop.f32.mrb[0].mxu0
        %v491 = vadd.f32 0.0, %v490
        %v492 = vpop.f32.mrb[0].mxu0
        %493 = vmatprep.mubr.f32.mxu0 0.0
        %494 = vmatmul.mubr.f32.gmra.mrb[0].mxu0 %v396
        %v495 = vpop.f32.mrb[0].mxu0
        %v496 = vadd.f32 0.0, %v495
        %v497 = vpop.f32.mrb[0].mxu0
        %498 = vmatprep.mubr.f32.mxu0 0.0
        %499 = vmatmul.mubr.f32.gmra.mrb[0].mxu0 %v399
        %v500 = vpop.f32.mrb[0].mxu0
        %v501 = vadd.f32 0.0, %v500
        %v502 = vpop.f32.mrb[0].mxu0
        %503 = vmatprep.mubr.f32.mxu0 0.0
        %504 = vmatmul.mubr.f32.gmra.mrb[0].mxu0 %v402
        %v505 = vpop.f32.mrb[0].mxu0
        %v506 = vadd.f32 0.0, %v505
        %v507 = vpop.f32.mrb[0].mxu0
        %508 = vmatprep.mubr.f32.mxu0 0.0
        %509 = vmatmul.mubr.f32.gmra.mrb[0].mxu0 %v405
        %v510 = vpop.f32.mrb[0].mxu0
        %v511 = vadd.f32 0.0, %v510
        %v512 = vpop.f32.mrb[0].mxu0
        %513 = vmatprep.mubr.f32.mxu0 0.0
        %514 = vmatmul.mubr.f32.gmra.mrb[0].mxu0 %v408
        %v515 = vpop.f32.mrb[0].mxu0
        %v516 = vadd.f32 0.0, %v515
        %v517 = vpop.f32.mrb[0].mxu0
        %518 = vmatprep.mubr.f32.mxu0 0.0
        %519 = vmatmul.mubr.f32.gmra.mrb[0].mxu0 %v411
        %v520 = vpop.f32.mrb[0].mxu0
        %v521 = vadd.f32 0.0, %v520
        %v522 = vpop.f32.mrb[0].mxu0
        %523 = vmatprep.mubr.f32.mxu0 0.0
        %524 = vmatmul.mubr.f32.gmra.mrb[0].mxu0 %v414
        %v525 = vpop.f32.mrb[0].mxu0
        %v526 = vadd.f32 0.0, %v525
        %v527 = vpop.f32.mrb[0].mxu0
        %528 = vmatprep.mubr.f32.mxu0 0.0
        %529 = vmatmul.mubr.f32.gmra.mrb[0].mxu0 %v417
        %v530 = vpop.f32.mrb[0].mxu0
        %v531 = vadd.f32 0.0, %v530
        %v532 = vpop.f32.mrb[0].mxu0
        %533 = vdwg.mxu0
        %534 = vmatprep.subr.mxu0 0.0
        %535 = vmatpush1.msra.mxu0 %v354
        %536 = vmatprep.subr.mxu0 0.0
        %537 = vmatpush1.msra.mxu0 %v355
        %538 = vmatprep.subr.mxu0 0.0
        %539 = vmatpush1.msra.mxu0 %v356
        %540 = vmatprep.subr.mxu0 0.0
        %541 = vmatpush1.msra.mxu0 %v357
        %542 = vmatprep.subr.mxu0 0.0
        %543 = vmatpush1.msra.mxu0 %v358
        %544 = vmatprep.subr.mxu0 0.0
        %545 = vmatpush1.msra.mxu0 %v359
        %546 = vmatprep.subr.mxu0 0.0
        %547 = vmatpush1.msra.mxu0 %v360
        %548 = vmatprep.subr.mxu0 0.0
        %549 = vmatpush1.msra.mxu0 %v361
        %550 = vmatprep.subr.mxu0 0.0
        %551 = vmatpush1.msra.mxu0 %v362
        %552 = vmatprep.subr.mxu0 0.0
        %553 = vmatpush1.msra.mxu0 %v363
        %554 = vmatprep.subr.mxu0 0.0
        %555 = vmatpush1.msra.mxu0 %v364
        %556 = vmatprep.subr.mxu0 0.0
        %557 = vmatpush1.msra.mxu0 %v365
        %558 = vmatprep.subr.mxu0 0.0
        %559 = vmatpush1.msra.mxu0 %v366
        %560 = vmatprep.subr.mxu0 0.0
        %561 = vmatpush1.msra.mxu0 %v367
        %562 = vmatprep.subr.mxu0 0.0
        %563 = vmatpush1.msra.mxu0 %v368
        %564 = vmatprep.subr.mxu0 0.0
        %565 = vmatpush1.msra.mxu0 %v369
        %566 = vmatprep.subr.mxu0 0.0
        %567 = vmatpush1.msra.mxu0 0.0
        %568 = vmatprep.subr.mxu0 0.0
        %569 = vmatpush1.msra.mxu0 0.0
        %570 = vmatprep.subr.mxu0 0.0
        %571 = vmatpush1.msra.mxu0 0.0
        %572 = vmatprep.subr.mxu0 0.0
        %573 = vmatpush1.msra.mxu0 0.0
        %574 = vmatprep.subr.mxu0 0.0
        %575 = vmatpush1.msra.mxu0 0.0
        %576 = vmatprep.subr.mxu0 0.0
        %577 = vmatpush1.msra.mxu0 0.0
        %578 = vmatprep.subr.mxu0 0.0
        %579 = vmatpush1.msra.mxu0 0.0
        %580 = vmatprep.subr.mxu0 0.0
        %581 = vmatpush1.msra.mxu0 0.0
        %582 = vmatprep.subr.mxu0 0.0
        %583 = vmatpush1.msra.mxu0 0.0
        %584 = vmatprep.subr.mxu0 0.0
        %585 = vmatpush1.msra.mxu0 0.0
        %586 = vmatprep.subr.mxu0 0.0
        %587 = vmatpush1.msra.mxu0 0.0
        %588 = vmatprep.subr.mxu0 0.0
        %589 = vmatpush1.msra.mxu0 0.0
        %590 = vmatprep.subr.mxu0 0.0
        %591 = vmatpush1.msra.mxu0 0.0
        %592 = vmatprep.subr.mxu0 0.0
        %593 = vmatpush1.msra.mxu0 0.0
        %594 = vmatprep.subr.mxu0 0.0
        %595 = vmatpush1.msra.mxu0 0.0
        %596 = vmatprep.subr.mxu0 0.0
        %597 = vmatpush1.msra.mxu0 0.0
        %598 = vmatprep.mubr.f32.mxu0 0.0
        %599 = vmatmul.mubr.f32.gmra.mrb[0].mxu0 %v344
        %v600 = vpop.f32.mrb[0].mxu0
        %v601 = vadd.f32 %v486, %v600
        %v602 = vpop.f32.mrb[0].mxu0
        %603 = vmatprep.mubr.f32.mxu0 0.0
        %604 = vmatmul.mubr.f32.gmra.mrb[0].mxu0 %v345
        %v605 = vpop.f32.mrb[0].mxu0
        %v606 = vadd.f32 %v491, %v605
        %v607 = vpop.f32.mrb[0].mxu0
        %608 = vmatprep.mubr.f32.mxu0 0.0
        %609 = vmatmul.mubr.f32.gmra.mrb[0].mxu0 %v346
        %v610 = vpop.f32.mrb[0].mxu0
        %v611 = vadd.f32 %v496, %v610
        %v612 = vpop.f32.mrb[0].mxu0
        %613 = vmatprep.mubr.f32.mxu0 0.0
        %614 = vmatmul.mubr.f32.gmra.mrb[0].mxu0 %v347
        %v615 = vpop.f32.mrb[0].mxu0
        %v616 = vadd.f32 %v501, %v615
        %v617 = vpop.f32.mrb[0].mxu0
        %618 = vmatprep.mubr.f32.mxu0 0.0
        %619 = vmatmul.mubr.f32.gmra.mrb[0].mxu0 %v348
        %v620 = vpop.f32.mrb[0].mxu0
        %v621 = vadd.f32 %v506, %v620
        %v622 = vpop.f32.mrb[0].mxu0
        %623 = vmatprep.mubr.f32.mxu0 0.0
        %624 = vmatmul.mubr.f32.gmra.mrb[0].mxu0 %v349
        %v625 = vpop.f32.mrb[0].mxu0
        %v626 = vadd.f32 %v511, %v625
        %v627 = vpop.f32.mrb[0].mxu0
        %628 = vmatprep.mubr.f32.mxu0 0.0
        %629 = vmatmul.mubr.f32.gmra.mrb[0].mxu0 %v350
        %v630 = vpop.f32.mrb[0].mxu0
        %v631 = vadd.f32 %v516, %v630
        %v632 = vpop.f32.mrb[0].mxu0
        %633 = vmatprep.mubr.f32.mxu0 0.0
        %634 = vmatmul.mubr.f32.gmra.mrb[0].mxu0 %v351
        %v635 = vpop.f32.mrb[0].mxu0
        %v636 = vadd.f32 %v521, %v635
        %v637 = vpop.f32.mrb[0].mxu0
        %638 = vmatprep.mubr.f32.mxu0 0.0
        %639 = vmatmul.mubr.f32.gmra.mrb[0].mxu0 %v352
        %v640 = vpop.f32.mrb[0].mxu0
        %v641 = vadd.f32 %v526, %v640
        %v642 = vpop.f32.mrb[0].mxu0
        %643 = vmatprep.mubr.f32.mxu0 0.0
        %644 = vmatmul.mubr.f32.gmra.mrb[0].mxu0 %v353
        %v645 = vpop.f32.mrb[0].mxu0
        %v646 = vadd.f32 %v531, %v645
        %v647 = vpop.f32.mrb[0].mxu0
        %648 = vdwg.mxu0
        %v649 = vlaneseq
        %v650 = vshrl.u32 %v649, 7
        %v651 = vsub.s32 0, %v650
        %v652 = vrot.slane %v342, %v651
        %v653 = vadd.f32 %v601, %v652
        %v654 = vadd.f32 %v606, %v652
        %v655 = vadd.f32 %v611, %v652
        %v656 = vadd.f32 %v616, %v652
        %v657 = vadd.f32 %v621, %v652
        %v658 = vadd.f32 %v626, %v652
        %v659 = vadd.f32 %v631, %v652
        %v660 = vadd.f32 %v636, %v652
        %v661 = vadd.f32 %v641, %v652
        %v662 = vadd.f32 %v646, %v652
        %v663 = vsel %vm388, %v653, 0.0
        %664 = vadd.xlane.f32.xlu0 %v663
        %v665 = vpop.xlane.xlu0 %664
        %v666 = vsel %vm388, %v654, 0.0
        %667 = vadd.xlane.f32.xlu0 %v666
        %v668 = vpop.xlane.xlu0 %667
        %v669 = vsel %vm388, %v655, 0.0
        %670 = vadd.xlane.f32.xlu0 %v669
        %v671 = vpop.xlane.xlu0 %670
        %v672 = vsel %vm388, %v656, 0.0
        %673 = vadd.xlane.f32.xlu0 %v672
        %v674 = vpop.xlane.xlu0 %673
        %v675 = vsel %vm388, %v657, 0.0
        %676 = vadd.xlane.f32.xlu0 %v675
        %v677 = vpop.xlane.xlu0 %676
        %v678 = vsel %vm388, %v658, 0.0
        %679 = vadd.xlane.f32.xlu0 %v678
        %v680 = vpop.xlane.xlu0 %679
        %v681 = vsel %vm388, %v659, 0.0
        %682 = vadd.xlane.f32.xlu0 %v681
        %v683 = vpop.xlane.xlu0 %682
        %v684 = vsel %vm388, %v660, 0.0
        %685 = vadd.xlane.f32.xlu0 %v684
        %v686 = vpop.xlane.xlu0 %685
        %v687 = vsel %vm388, %v661, 0.0
        %688 = vadd.xlane.f32.xlu0 %v687
        %v689 = vpop.xlane.xlu0 %688
        %v690 = vsel %vm388, %v662, 0.0
        %691 = vadd.xlane.f32.xlu0 %v690
        %v692 = vpop.xlane.xlu0 %691
        %v693 = vrcp.pop 64.0
        %v694 = vmul.f32 %v665, %v693
        %v695 = vmul.f32 %v668, %v693
        %v696 = vmul.f32 %v671, %v693
        %v697 = vmul.f32 %v674, %v693
        %v698 = vmul.f32 %v677, %v693
        %v699 = vmul.f32 %v680, %v693
        %v700 = vmul.f32 %v683, %v693
        %v701 = vmul.f32 %v686, %v693
        %v702 = vmul.f32 %v689, %v693
        %v703 = vmul.f32 %v692, %v693
        %v704 = vmul.f32 %v653, %v653
        %v705 = vmul.f32 %v654, %v654
        %v706 = vmul.f32 %v655, %v655
        %v707 = vmul.f32 %v656, %v656
        %v708 = vmul.f32 %v657, %v657
        %v709 = vmul.f32 %v658, %v658
        %v710 = vmul.f32 %v659, %v659
        %v711 = vmul.f32 %v660, %v660
        %v712 = vmul.f32 %v661, %v661
        %v713 = vmul.f32 %v662, %v662
        %v714 = vsel %vm388, %v704, 0.0
        %715 = vadd.xlane.f32.xlu0 %v714
        %v716 = vpop.xlane.xlu0 %715
        %v717 = vsel %vm388, %v705, 0.0
        %718 = vadd.xlane.f32.xlu0 %v717
        %v719 = vpop.xlane.xlu0 %718
        %v720 = vsel %vm388, %v706, 0.0
        %721 = vadd.xlane.f32.xlu0 %v720
        %v722 = vpop.xlane.xlu0 %721
        %v723 = vsel %vm388, %v707, 0.0
        %724 = vadd.xlane.f32.xlu0 %v723
        %v725 = vpop.xlane.xlu0 %724
        %v726 = vsel %vm388, %v708, 0.0
        %727 = vadd.xlane.f32.xlu0 %v726
        %v728 = vpop.xlane.xlu0 %727
        %v729 = vsel %vm388, %v709, 0.0
        %730 = vadd.xlane.f32.xlu0 %v729
        %v731 = vpop.xlane.xlu0 %730
        %v732 = vsel %vm388, %v710, 0.0
        %733 = vadd.xlane.f32.xlu0 %v732
        %v734 = vpop.xlane.xlu0 %733
        %v735 = vsel %vm388, %v711, 0.0
        %736 = vadd.xlane.f32.xlu0 %v735
        %v737 = vpop.xlane.xlu0 %736
        %v738 = vsel %vm388, %v712, 0.0
        %739 = vadd.xlane.f32.xlu0 %v738
        %v740 = vpop.xlane.xlu0 %739
        %v741 = vsel %vm388, %v713, 0.0
        %742 = vadd.xlane.f32.xlu0 %v741
        %v743 = vpop.xlane.xlu0 %742
        %v744 = vmul.f32 %v716, %v693
        %v745 = vmul.f32 %v719, %v693
        %v746 = vmul.f32 %v722, %v693
        %v747 = vmul.f32 %v725, %v693
        %v748 = vmul.f32 %v728, %v693
        %v749 = vmul.f32 %v731, %v693
        %v750 = vmul.f32 %v734, %v693
        %v751 = vmul.f32 %v737, %v693
        %v752 = vmul.f32 %v740, %v693
        %v753 = vmul.f32 %v743, %v693
        %v754 = vmul.f32 %v694, %v694
        %v755 = vmul.f32 %v695, %v695
        %v756 = vmul.f32 %v696, %v696
        %v757 = vmul.f32 %v697, %v697
        %v758 = vmul.f32 %v698, %v698
        %v759 = vmul.f32 %v699, %v699
        %v760 = vmul.f32 %v700, %v700
        %v761 = vmul.f32 %v701, %v701
        %v762 = vmul.f32 %v702, %v702
        %v763 = vmul.f32 %v703, %v703
        %v764 = vsub.f32 %v744, %v754
        %v765 = vsub.f32 %v745, %v755
        %v766 = vsub.f32 %v746, %v756
        %v767 = vsub.f32 %v747, %v757
        %v768 = vsub.f32 %v748, %v758
        %v769 = vsub.f32 %v749, %v759
        %v770 = vsub.f32 %v750, %v760
        %v771 = vsub.f32 %v751, %v761
        %v772 = vsub.f32 %v752, %v762
        %v773 = vsub.f32 %v753, %v763
        %v774 = vmax.f32 %v764, 0.0
        %v775 = vmax.f32 %v765, 0.0
        %v776 = vmax.f32 %v766, 0.0
        %v777 = vmax.f32 %v767, 0.0
        %v778 = vmax.f32 %v768, 0.0
        %v779 = vmax.f32 %v769, 0.0
        %v780 = vmax.f32 %v770, 0.0
        %v781 = vmax.f32 %v771, 0.0
        %v782 = vmax.f32 %v772, 0.0
        %v783 = vmax.f32 %v773, 0.0
        %v784 = vsub.f32 %v653, %v694
        %v785 = vsub.f32 %v654, %v695
        %v786 = vsub.f32 %v655, %v696
        %v787 = vsub.f32 %v656, %v697
        %v788 = vsub.f32 %v657, %v698
        %v789 = vsub.f32 %v658, %v699
        %v790 = vsub.f32 %v659, %v700
        %v791 = vsub.f32 %v660, %v701
        %v792 = vsub.f32 %v661, %v702
        %v793 = vsub.f32 %v662, %v703
        %v794 = vadd.f32 %v774, 1e-05
        %v795 = vadd.f32 %v775, 1e-05
        %v796 = vadd.f32 %v776, 1e-05
        %v797 = vadd.f32 %v777, 1e-05
        %v798 = vadd.f32 %v778, 1e-05
        %v799 = vadd.f32 %v779, 1e-05
        %v800 = vadd.f32 %v780, 1e-05
        %v801 = vadd.f32 %v781, 1e-05
        %v802 = vadd.f32 %v782, 1e-05
        %v803 = vadd.f32 %v783, 1e-05
        %v804 = vrsqrt.pop %v794
        %v805 = vrsqrt.pop %v795
        %v806 = vrsqrt.pop %v796
        %v807 = vrsqrt.pop %v797
        %v808 = vrsqrt.pop %v798
        %v809 = vrsqrt.pop %v799
        %v810 = vrsqrt.pop %v800
        %v811 = vrsqrt.pop %v801
        %v812 = vrsqrt.pop %v802
        %v813 = vrsqrt.pop %v803
        %v814 = vmul.f32 %v784, %v804
        %v815 = vmul.f32 %v785, %v805
        %v816 = vmul.f32 %v786, %v806
        %v817 = vmul.f32 %v787, %v807
        %v818 = vmul.f32 %v788, %v808
        %v819 = vmul.f32 %v789, %v809
        %v820 = vmul.f32 %v790, %v810
        %v821 = vmul.f32 %v791, %v811
        %v822 = vmul.f32 %v792, %v812
        %v823 = vmul.f32 %v793, %v813
        %v824 = vlaneseq
        %v825 = vshrl.u32 %v824, 7
        %v826 = vsub.s32 1, %v825
        %v827 = vrot.slane %v342, %v826
        %v828 = vmul.f32 %v814, %v827
        %v829 = vmul.f32 %v815, %v827
        %v830 = vmul.f32 %v816, %v827
        %v831 = vmul.f32 %v817, %v827
        %v832 = vmul.f32 %v818, %v827
        %v833 = vmul.f32 %v819, %v827
        %v834 = vmul.f32 %v820, %v827
        %v835 = vmul.f32 %v821, %v827
        %v836 = vmul.f32 %v822, %v827
        %v837 = vmul.f32 %v823, %v827
        %v838 = vlaneseq
        %v839 = vshrl.u32 %v838, 7
        %v840 = vsub.s32 2, %v839
        %v841 = vrot.slane %v342, %v840
        %v842 = vadd.f32 %v828, %v841
        %v843 = vadd.f32 %v829, %v841
        %v844 = vadd.f32 %v830, %v841
        %v845 = vadd.f32 %v831, %v841
        %v846 = vadd.f32 %v832, %v841
        %v847 = vadd.f32 %v833, %v841
        %v848 = vadd.f32 %v834, %v841
        %v849 = vadd.f32 %v835, %v841
        %v850 = vadd.f32 %v836, %v841
        %v851 = vadd.f32 %v837, %v841
        %v852 = vmax.f32 %v842, 0.0
        %v853 = vmax.f32 %v843, 0.0
        %v854 = vmax.f32 %v844, 0.0
        %v855 = vmax.f32 %v845, 0.0
        %v856 = vmax.f32 %v846, 0.0
        %v857 = vmax.f32 %v847, 0.0
        %v858 = vmax.f32 %v848, 0.0
        %v859 = vmax.f32 %v849, 0.0
        %v860 = vmax.f32 %v850, 0.0
        %v861 = vmax.f32 %v851, 0.0
        %v862 = vld [vmem:[%s4] sm:$0xff]
        %v863 = vld [vmem:[%s4 + $0x8] sm:$0xff]
        %v864 = vld [vmem:[%s4 + $0x10] sm:$0xff]
        %v865 = vld [vmem:[%s4 + $0x18] sm:$0xff]
        %v866 = vld [vmem:[%s4 + $0x20] sm:$0xff]
        %v867 = vld [vmem:[%s4 + $0x28] sm:$0xff]
        %v868 = vld [vmem:[%s4 + $0x30] sm:$0xff]
        %v869 = vld [vmem:[%s4 + $0x38] sm:$0xff]
        %v870 = vlaneseq
        %v871 = vshrl.u32 %v870, 7
        %v872 = vsub.s32 0, %v871
        %v873 = vrot.slane %v343, %v872
        %v875 = vsel %vm388, %v852, 0
        %v878 = vsel %vm388, %v853, 0
        %v881 = vsel %vm388, %v854, 0
        %v884 = vsel %vm388, %v855, 0
        %v887 = vsel %vm388, %v856, 0
        %v890 = vsel %vm388, %v857, 0
        %v893 = vsel %vm388, %v858, 0
        %v896 = vsel %vm388, %v859, 0
        %v899 = vsel %vm388, %v860, 0
        %v902 = vsel %vm388, %v861, 0
        %904 = vmatprep.subr.mxu0 0.0
        %905 = vmatpush1.msra.mxu0 %v862
        %906 = vmatprep.subr.mxu0 0.0
        %907 = vmatpush1.msra.mxu0 %v863
        %908 = vmatprep.subr.mxu0 0.0
        %909 = vmatpush1.msra.mxu0 %v864
        %910 = vmatprep.subr.mxu0 0.0
        %911 = vmatpush1.msra.mxu0 %v865
        %912 = vmatprep.subr.mxu0 0.0
        %913 = vmatpush1.msra.mxu0 %v866
        %914 = vmatprep.subr.mxu0 0.0
        %915 = vmatpush1.msra.mxu0 %v867
        %916 = vmatprep.subr.mxu0 0.0
        %917 = vmatpush1.msra.mxu0 %v868
        %918 = vmatprep.subr.mxu0 0.0
        %919 = vmatpush1.msra.mxu0 %v869
        %920 = vmatprep.subr.mxu0 0.0
        %921 = vmatpush1.msra.mxu0 0.0
        %922 = vmatprep.subr.mxu0 0.0
        %923 = vmatpush1.msra.mxu0 0.0
        %924 = vmatprep.subr.mxu0 0.0
        %925 = vmatpush1.msra.mxu0 0.0
        %926 = vmatprep.subr.mxu0 0.0
        %927 = vmatpush1.msra.mxu0 0.0
        %928 = vmatprep.subr.mxu0 0.0
        %929 = vmatpush1.msra.mxu0 0.0
        %930 = vmatprep.subr.mxu0 0.0
        %931 = vmatpush1.msra.mxu0 0.0
        %932 = vmatprep.subr.mxu0 0.0
        %933 = vmatpush1.msra.mxu0 0.0
        %934 = vmatprep.subr.mxu0 0.0
        %935 = vmatpush1.msra.mxu0 0.0
        %936 = vmatprep.subr.mxu0 0.0
        %937 = vmatpush1.msra.mxu0 0.0
        %938 = vmatprep.subr.mxu0 0.0
        %939 = vmatpush1.msra.mxu0 0.0
        %940 = vmatprep.subr.mxu0 0.0
        %941 = vmatpush1.msra.mxu0 0.0
        %942 = vmatprep.subr.mxu0 0.0
        %943 = vmatpush1.msra.mxu0 0.0
        %944 = vmatprep.subr.mxu0 0.0
        %945 = vmatpush1.msra.mxu0 0.0
        %946 = vmatprep.subr.mxu0 0.0
        %947 = vmatpush1.msra.mxu0 0.0
        %948 = vmatprep.subr.mxu0 0.0
        %949 = vmatpush1.msra.mxu0 0.0
        %950 = vmatprep.subr.mxu0 0.0
        %951 = vmatpush1.msra.mxu0 0.0
        %952 = vmatprep.subr.mxu0 0.0
        %953 = vmatpush1.msra.mxu0 0.0
        %954 = vmatprep.subr.mxu0 0.0
        %955 = vmatpush1.msra.mxu0 0.0
        %956 = vmatprep.subr.mxu0 0.0
        %957 = vmatpush1.msra.mxu0 0.0
        %958 = vmatprep.subr.mxu0 0.0
        %959 = vmatpush1.msra.mxu0 0.0
        %960 = vmatprep.subr.mxu0 0.0
        %961 = vmatpush1.msra.mxu0 0.0
        %962 = vmatprep.subr.mxu0 0.0
        %963 = vmatpush1.msra.mxu0 0.0
        %964 = vmatprep.subr.mxu0 0.0
        %965 = vmatpush1.msra.mxu0 0.0
        %966 = vmatprep.subr.mxu0 0.0
        %967 = vmatpush1.msra.mxu0 0.0
        %968 = vmatprep.mubr.f32.mxu0 0.0
        %969 = vmatmul.mubr.f32.gmra.mrb[0].mxu0 %v875
        %v970 = vpop.f32.mrb[0].mxu0
        %v971 = vadd.f32 %v873, %v970
        %v972 = vpop.f32.mrb[0].mxu0
        %973 = vmatprep.mubr.f32.mxu0 0.0
        %974 = vmatmul.mubr.f32.gmra.mrb[0].mxu0 %v878
        %v975 = vpop.f32.mrb[0].mxu0
        %v976 = vadd.f32 %v873, %v975
        %v977 = vpop.f32.mrb[0].mxu0
        %978 = vmatprep.mubr.f32.mxu0 0.0
        %979 = vmatmul.mubr.f32.gmra.mrb[0].mxu0 %v881
        %v980 = vpop.f32.mrb[0].mxu0
        %v981 = vadd.f32 %v873, %v980
        %v982 = vpop.f32.mrb[0].mxu0
        %983 = vmatprep.mubr.f32.mxu0 0.0
        %984 = vmatmul.mubr.f32.gmra.mrb[0].mxu0 %v884
        %v985 = vpop.f32.mrb[0].mxu0
        %v986 = vadd.f32 %v873, %v985
        %v987 = vpop.f32.mrb[0].mxu0
        %988 = vmatprep.mubr.f32.mxu0 0.0
        %989 = vmatmul.mubr.f32.gmra.mrb[0].mxu0 %v887
        %v990 = vpop.f32.mrb[0].mxu0
        %v991 = vadd.f32 %v873, %v990
        %v992 = vpop.f32.mrb[0].mxu0
        %993 = vmatprep.mubr.f32.mxu0 0.0
        %994 = vmatmul.mubr.f32.gmra.mrb[0].mxu0 %v890
        %v995 = vpop.f32.mrb[0].mxu0
        %v996 = vadd.f32 %v873, %v995
        %v997 = vpop.f32.mrb[0].mxu0
        %998 = vmatprep.mubr.f32.mxu0 0.0
        %999 = vmatmul.mubr.f32.gmra.mrb[0].mxu0 %v893
        %v1000 = vpop.f32.mrb[0].mxu0
        %v1001 = vadd.f32 %v873, %v1000
        %v1002 = vpop.f32.mrb[0].mxu0
        %1003 = vmatprep.mubr.f32.mxu0 0.0
        %1004 = vmatmul.mubr.f32.gmra.mrb[0].mxu0 %v896
        %v1005 = vpop.f32.mrb[0].mxu0
        %v1006 = vadd.f32 %v873, %v1005
        %v1007 = vpop.f32.mrb[0].mxu0
        %1008 = vmatprep.mubr.f32.mxu0 0.0
        %1009 = vmatmul.mubr.f32.gmra.mrb[0].mxu0 %v899
        %v1010 = vpop.f32.mrb[0].mxu0
        %v1011 = vadd.f32 %v873, %v1010
        %v1012 = vpop.f32.mrb[0].mxu0
        %1013 = vmatprep.mubr.f32.mxu0 0.0
        %1014 = vmatmul.mubr.f32.gmra.mrb[0].mxu0 %v902
        %v1015 = vpop.f32.mrb[0].mxu0
        %v1016 = vadd.f32 %v873, %v1015
        %v1017 = vpop.f32.mrb[0].mxu0
        %1018 = vdwg.mxu0
        %vm1019 = vcmask 261120
        %v1020 = vsel %vm1019, %v971, 0.0
        %1021 = vadd.xlane.f32.xlu0 %v1020
        %v1022 = vpop.xlane.xlu0 %1021
        %v1023 = vsel %vm1019, %v976, 0.0
        %1024 = vadd.xlane.f32.xlu0 %v1023
        %v1025 = vpop.xlane.xlu0 %1024
        %v1026 = vsel %vm1019, %v981, 0.0
        %1027 = vadd.xlane.f32.xlu0 %v1026
        %v1028 = vpop.xlane.xlu0 %1027
        %v1029 = vsel %vm1019, %v986, 0.0
        %1030 = vadd.xlane.f32.xlu0 %v1029
        %v1031 = vpop.xlane.xlu0 %1030
        %v1032 = vsel %vm1019, %v991, 0.0
        %1033 = vadd.xlane.f32.xlu0 %v1032
        %v1034 = vpop.xlane.xlu0 %1033
        %v1035 = vsel %vm1019, %v996, 0.0
        %1036 = vadd.xlane.f32.xlu0 %v1035
        %v1037 = vpop.xlane.xlu0 %1036
        %v1038 = vsel %vm1019, %v1001, 0.0
        %1039 = vadd.xlane.f32.xlu0 %v1038
        %v1040 = vpop.xlane.xlu0 %1039
        %v1041 = vsel %vm1019, %v1006, 0.0
        %1042 = vadd.xlane.f32.xlu0 %v1041
        %v1043 = vpop.xlane.xlu0 %1042
        %v1044 = vsel %vm1019, %v1011, 0.0
        %1045 = vadd.xlane.f32.xlu0 %v1044
        %v1046 = vpop.xlane.xlu0 %1045
        %v1047 = vsel %vm1019, %v1016, 0.0
        %1048 = vadd.xlane.f32.xlu0 %v1047
        %v1049 = vpop.xlane.xlu0 %1048
        %v1050 = vrcp.pop 32.0
        %v1051 = vmul.f32 %v1022, %v1050
        %v1052 = vmul.f32 %v1025, %v1050
        %v1053 = vmul.f32 %v1028, %v1050
        %v1054 = vmul.f32 %v1031, %v1050
        %v1055 = vmul.f32 %v1034, %v1050
        %v1056 = vmul.f32 %v1037, %v1050
        %v1057 = vmul.f32 %v1040, %v1050
        %v1058 = vmul.f32 %v1043, %v1050
        %v1059 = vmul.f32 %v1046, %v1050
        %v1060 = vmul.f32 %v1049, %v1050
        %v1061 = vmul.f32 %v971, %v971
        %v1062 = vmul.f32 %v976, %v976
        %v1063 = vmul.f32 %v981, %v981
        %v1064 = vmul.f32 %v986, %v986
        %v1065 = vmul.f32 %v991, %v991
        %v1066 = vmul.f32 %v996, %v996
        %v1067 = vmul.f32 %v1001, %v1001
        %v1068 = vmul.f32 %v1006, %v1006
        %v1069 = vmul.f32 %v1011, %v1011
        %v1070 = vmul.f32 %v1016, %v1016
        %v1071 = vsel %vm1019, %v1061, 0.0
        %1072 = vadd.xlane.f32.xlu0 %v1071
        %v1073 = vpop.xlane.xlu0 %1072
        %v1074 = vsel %vm1019, %v1062, 0.0
        %1075 = vadd.xlane.f32.xlu0 %v1074
        %v1076 = vpop.xlane.xlu0 %1075
        %v1077 = vsel %vm1019, %v1063, 0.0
        %1078 = vadd.xlane.f32.xlu0 %v1077
        %v1079 = vpop.xlane.xlu0 %1078
        %v1080 = vsel %vm1019, %v1064, 0.0
        %1081 = vadd.xlane.f32.xlu0 %v1080
        %v1082 = vpop.xlane.xlu0 %1081
        %v1083 = vsel %vm1019, %v1065, 0.0
        %1084 = vadd.xlane.f32.xlu0 %v1083
        %v1085 = vpop.xlane.xlu0 %1084
        %v1086 = vsel %vm1019, %v1066, 0.0
        %1087 = vadd.xlane.f32.xlu0 %v1086
        %v1088 = vpop.xlane.xlu0 %1087
        %v1089 = vsel %vm1019, %v1067, 0.0
        %1090 = vadd.xlane.f32.xlu0 %v1089
        %v1091 = vpop.xlane.xlu0 %1090
        %v1092 = vsel %vm1019, %v1068, 0.0
        %1093 = vadd.xlane.f32.xlu0 %v1092
        %v1094 = vpop.xlane.xlu0 %1093
        %v1095 = vsel %vm1019, %v1069, 0.0
        %1096 = vadd.xlane.f32.xlu0 %v1095
        %v1097 = vpop.xlane.xlu0 %1096
        %v1098 = vsel %vm1019, %v1070, 0.0
        %1099 = vadd.xlane.f32.xlu0 %v1098
        %v1100 = vpop.xlane.xlu0 %1099
        %v1101 = vmul.f32 %v1073, %v1050
        %v1102 = vmul.f32 %v1076, %v1050
        %v1103 = vmul.f32 %v1079, %v1050
        %v1104 = vmul.f32 %v1082, %v1050
        %v1105 = vmul.f32 %v1085, %v1050
        %v1106 = vmul.f32 %v1088, %v1050
        %v1107 = vmul.f32 %v1091, %v1050
        %v1108 = vmul.f32 %v1094, %v1050
        %v1109 = vmul.f32 %v1097, %v1050
        %v1110 = vmul.f32 %v1100, %v1050
        %v1111 = vmul.f32 %v1051, %v1051
        %v1112 = vmul.f32 %v1052, %v1052
        %v1113 = vmul.f32 %v1053, %v1053
        %v1114 = vmul.f32 %v1054, %v1054
        %v1115 = vmul.f32 %v1055, %v1055
        %v1116 = vmul.f32 %v1056, %v1056
        %v1117 = vmul.f32 %v1057, %v1057
        %v1118 = vmul.f32 %v1058, %v1058
        %v1119 = vmul.f32 %v1059, %v1059
        %v1120 = vmul.f32 %v1060, %v1060
        %v1121 = vsub.f32 %v1101, %v1111
        %v1122 = vsub.f32 %v1102, %v1112
        %v1123 = vsub.f32 %v1103, %v1113
        %v1124 = vsub.f32 %v1104, %v1114
        %v1125 = vsub.f32 %v1105, %v1115
        %v1126 = vsub.f32 %v1106, %v1116
        %v1127 = vsub.f32 %v1107, %v1117
        %v1128 = vsub.f32 %v1108, %v1118
        %v1129 = vsub.f32 %v1109, %v1119
        %v1130 = vsub.f32 %v1110, %v1120
        %v1131 = vmax.f32 %v1121, 0.0
        %v1132 = vmax.f32 %v1122, 0.0
        %v1133 = vmax.f32 %v1123, 0.0
        %v1134 = vmax.f32 %v1124, 0.0
        %v1135 = vmax.f32 %v1125, 0.0
        %v1136 = vmax.f32 %v1126, 0.0
        %v1137 = vmax.f32 %v1127, 0.0
        %v1138 = vmax.f32 %v1128, 0.0
        %v1139 = vmax.f32 %v1129, 0.0
        %v1140 = vmax.f32 %v1130, 0.0
        %v1141 = vsub.f32 %v971, %v1051
        %v1142 = vsub.f32 %v976, %v1052
        %v1143 = vsub.f32 %v981, %v1053
        %v1144 = vsub.f32 %v986, %v1054
        %v1145 = vsub.f32 %v991, %v1055
        %v1146 = vsub.f32 %v996, %v1056
        %v1147 = vsub.f32 %v1001, %v1057
        %v1148 = vsub.f32 %v1006, %v1058
        %v1149 = vsub.f32 %v1011, %v1059
        %v1150 = vsub.f32 %v1016, %v1060
        %v1151 = vadd.f32 %v1131, 1e-05
        %v1152 = vadd.f32 %v1132, 1e-05
        %v1153 = vadd.f32 %v1133, 1e-05
        %v1154 = vadd.f32 %v1134, 1e-05
        %v1155 = vadd.f32 %v1135, 1e-05
        %v1156 = vadd.f32 %v1136, 1e-05
        %v1157 = vadd.f32 %v1137, 1e-05
        %v1158 = vadd.f32 %v1138, 1e-05
        %v1159 = vadd.f32 %v1139, 1e-05
        %v1160 = vadd.f32 %v1140, 1e-05
        %v1161 = vrsqrt.pop %v1151
        %v1162 = vrsqrt.pop %v1152
        %v1163 = vrsqrt.pop %v1153
        %v1164 = vrsqrt.pop %v1154
        %v1165 = vrsqrt.pop %v1155
        %v1166 = vrsqrt.pop %v1156
        %v1167 = vrsqrt.pop %v1157
        %v1168 = vrsqrt.pop %v1158
        %v1169 = vrsqrt.pop %v1159
        %v1170 = vrsqrt.pop %v1160
        %v1171 = vmul.f32 %v1141, %v1161
        %v1172 = vmul.f32 %v1142, %v1162
        %v1173 = vmul.f32 %v1143, %v1163
        %v1174 = vmul.f32 %v1144, %v1164
        %v1175 = vmul.f32 %v1145, %v1165
        %v1176 = vmul.f32 %v1146, %v1166
        %v1177 = vmul.f32 %v1147, %v1167
        %v1178 = vmul.f32 %v1148, %v1168
        %v1179 = vmul.f32 %v1149, %v1169
        %v1180 = vmul.f32 %v1150, %v1170
        %v1181 = vlaneseq
        %v1182 = vshrl.u32 %v1181, 7
        %v1183 = vsub.s32 1, %v1182
        %v1184 = vrot.slane %v343, %v1183
        %v1185 = vmul.f32 %v1171, %v1184
        %v1186 = vmul.f32 %v1172, %v1184
        %v1187 = vmul.f32 %v1173, %v1184
        %v1188 = vmul.f32 %v1174, %v1184
        %v1189 = vmul.f32 %v1175, %v1184
        %v1190 = vmul.f32 %v1176, %v1184
        %v1191 = vmul.f32 %v1177, %v1184
        %v1192 = vmul.f32 %v1178, %v1184
        %v1193 = vmul.f32 %v1179, %v1184
        %v1194 = vmul.f32 %v1180, %v1184
        %v1195 = vlaneseq
        %v1196 = vshrl.u32 %v1195, 7
        %v1197 = vsub.s32 2, %v1196
        %v1198 = vrot.slane %v343, %v1197
        %v1199 = vadd.f32 %v1185, %v1198
        %v1200 = vadd.f32 %v1186, %v1198
        %v1201 = vadd.f32 %v1187, %v1198
        %v1202 = vadd.f32 %v1188, %v1198
        %v1203 = vadd.f32 %v1189, %v1198
        %v1204 = vadd.f32 %v1190, %v1198
        %v1205 = vadd.f32 %v1191, %v1198
        %v1206 = vadd.f32 %v1192, %v1198
        %v1207 = vadd.f32 %v1193, %v1198
        %v1208 = vadd.f32 %v1194, %v1198
        %v1209 = vmax.f32 %v1199, 0.0
        %v1210 = vmax.f32 %v1200, 0.0
        %v1211 = vmax.f32 %v1201, 0.0
        %v1212 = vmax.f32 %v1202, 0.0
        %v1213 = vmax.f32 %v1203, 0.0
        %v1214 = vmax.f32 %v1204, 0.0
        %v1215 = vmax.f32 %v1205, 0.0
        %v1216 = vmax.f32 %v1206, 0.0
        %v1217 = vmax.f32 %v1207, 0.0
        %v1218 = vmax.f32 %v1208, 0.0
        %v1219 = vlaneseq
        %v1220 = vshrl.u32 %v1219, 7
        %v1221 = vsub.s32 3, %v1220
        %v1222 = vrot.slane %v343, %v1221
        %v1223 = vmul.f32 %v1209, %v1222
        %v1224 = vmul.f32 %v1210, %v1222
        %v1225 = vmul.f32 %v1211, %v1222
        %v1226 = vmul.f32 %v1212, %v1222
        %v1227 = vmul.f32 %v1213, %v1222
        %v1228 = vmul.f32 %v1214, %v1222
        %v1229 = vmul.f32 %v1215, %v1222
        %v1230 = vmul.f32 %v1216, %v1222
        %v1231 = vmul.f32 %v1217, %v1222
        %v1232 = vmul.f32 %v1218, %v1222
        %v1233 = vsel %vm1019, %v1223, 0.0
        %1234 = vadd.xlane.f32.xlu0 %v1233
        %v1235 = vpop.xlane.xlu0 %1234
        %v1236 = vsel %vm1019, %v1224, 0.0
        %1237 = vadd.xlane.f32.xlu0 %v1236
        %v1238 = vpop.xlane.xlu0 %1237
        %v1239 = vsel %vm1019, %v1225, 0.0
        %1240 = vadd.xlane.f32.xlu0 %v1239
        %v1241 = vpop.xlane.xlu0 %1240
        %v1242 = vsel %vm1019, %v1226, 0.0
        %1243 = vadd.xlane.f32.xlu0 %v1242
        %v1244 = vpop.xlane.xlu0 %1243
        %v1245 = vsel %vm1019, %v1227, 0.0
        %1246 = vadd.xlane.f32.xlu0 %v1245
        %v1247 = vpop.xlane.xlu0 %1246
        %v1248 = vsel %vm1019, %v1228, 0.0
        %1249 = vadd.xlane.f32.xlu0 %v1248
        %v1250 = vpop.xlane.xlu0 %1249
        %v1251 = vsel %vm1019, %v1229, 0.0
        %1252 = vadd.xlane.f32.xlu0 %v1251
        %v1253 = vpop.xlane.xlu0 %1252
        %v1254 = vsel %vm1019, %v1230, 0.0
        %1255 = vadd.xlane.f32.xlu0 %v1254
        %v1256 = vpop.xlane.xlu0 %1255
        %v1257 = vsel %vm1019, %v1231, 0.0
        %1258 = vadd.xlane.f32.xlu0 %v1257
        %v1259 = vpop.xlane.xlu0 %1258
        %v1260 = vsel %vm1019, %v1232, 0.0
        %1261 = vadd.xlane.f32.xlu0 %v1260
        %v1262 = vpop.xlane.xlu0 %1261
        %v1263 = vlaneseq
        %v1264 = vshrl.u32 %v1263, 7
        %v1265 = vsub.s32 4, %v1264
        %v1266 = vrot.slane %v343, %v1265
        %v1267 = vadd.f32 %v1235, %v1266
        %v1268 = vadd.f32 %v1238, %v1266
        %v1269 = vadd.f32 %v1241, %v1266
        %v1270 = vadd.f32 %v1244, %v1266
        %v1271 = vadd.f32 %v1247, %v1266
        %v1272 = vadd.f32 %v1250, %v1266
        %v1273 = vadd.f32 %v1253, %v1266
        %v1274 = vadd.f32 %v1256, %v1266
        %v1275 = vadd.f32 %v1259, %v1266
        %v1276 = vadd.f32 %v1262, %v1266
        %v1277 = vxor.u32 %v1267, 2147483648
        %v1278 = vxor.u32 %v1268, 2147483648
        %v1279 = vxor.u32 %v1269, 2147483648
        %v1280 = vxor.u32 %v1270, 2147483648
        %v1281 = vxor.u32 %v1271, 2147483648
        %v1282 = vxor.u32 %v1272, 2147483648
        %v1283 = vxor.u32 %v1273, 2147483648
        %v1284 = vxor.u32 %v1274, 2147483648
        %v1285 = vxor.u32 %v1275, 2147483648
        %v1286 = vxor.u32 %v1276, 2147483648
        %v1287 = vmul.f32 %v1277, 1.442695
        %v1288 = vpow.pop %v1287
        %v1289 = vmul.f32 %v1278, 1.442695
        %v1290 = vpow.pop %v1289
        %v1291 = vmul.f32 %v1279, 1.442695
        %v1292 = vpow.pop %v1291
        %v1293 = vmul.f32 %v1280, 1.442695
        %v1294 = vpow.pop %v1293
        %v1295 = vmul.f32 %v1281, 1.442695
        %v1296 = vpow.pop %v1295
        %v1297 = vmul.f32 %v1282, 1.442695
        %v1298 = vpow.pop %v1297
        %v1299 = vmul.f32 %v1283, 1.442695
        %v1300 = vpow.pop %v1299
        %v1301 = vmul.f32 %v1284, 1.442695
        %v1302 = vpow.pop %v1301
        %v1303 = vmul.f32 %v1285, 1.442695
        %v1304 = vpow.pop %v1303
        %v1305 = vmul.f32 %v1286, 1.442695
        %v1306 = vpow.pop %v1305
        %v1307 = vadd.f32 %v1288, 1.0
        %v1308 = vadd.f32 %v1290, 1.0
        %v1309 = vadd.f32 %v1292, 1.0
        %v1310 = vadd.f32 %v1294, 1.0
        %v1311 = vadd.f32 %v1296, 1.0
        %v1312 = vadd.f32 %v1298, 1.0
        %v1313 = vadd.f32 %v1300, 1.0
        %v1314 = vadd.f32 %v1302, 1.0
        %v1315 = vadd.f32 %v1304, 1.0
        %v1316 = vadd.f32 %v1306, 1.0
        %v1317 = vrcp.pop %v1307
        %v1318 = vmul.f32 1.0, %v1317
        %v1319 = vrcp.pop %v1308
        %v1320 = vmul.f32 1.0, %v1319
        %v1321 = vrcp.pop %v1309
        %v1322 = vmul.f32 1.0, %v1321
        %v1323 = vrcp.pop %v1310
        %v1324 = vmul.f32 1.0, %v1323
        %v1325 = vrcp.pop %v1311
        %v1326 = vmul.f32 1.0, %v1325
        %v1327 = vrcp.pop %v1312
        %v1328 = vmul.f32 1.0, %v1327
        %v1329 = vrcp.pop %v1313
        %v1330 = vmul.f32 1.0, %v1329
        %v1331 = vrcp.pop %v1314
        %v1332 = vmul.f32 1.0, %v1331
        %v1333 = vrcp.pop %v1315
        %v1334 = vmul.f32 1.0, %v1333
        %v1335 = vrcp.pop %v1316
        %v1336 = vmul.f32 1.0, %v1335
        %vm1337 = vcmask 7168
        %1338 = vst.msk [vmem:[%s308] sm:$0xff] %vm1337, %v1318
        %1339 = vst.msk [vmem:[%s308 + $0x8] sm:$0xff] %vm1337, %v1320
        %1340 = vst.msk [vmem:[%s308 + $0x10] sm:$0xff] %vm1337, %v1322
        %1341 = vst.msk [vmem:[%s308 + $0x18] sm:$0xff] %vm1337, %v1324
        %1342 = vst.msk [vmem:[%s308 + $0x20] sm:$0xff] %vm1337, %v1326
        %1343 = vst.msk [vmem:[%s308 + $0x28] sm:$0xff] %vm1337, %v1328
        %1344 = vst.msk [vmem:[%s308 + $0x30] sm:$0xff] %vm1337, %v1330
        %1345 = vst.msk [vmem:[%s308 + $0x38] sm:$0xff] %vm1337, %v1332
        %1346 = vst.msk [vmem:[%s308 + $0x40] sm:$0xff] %vm1337, %v1334
        %1347 = vst.msk [vmem:[%s308 + $0x48] sm:$0xff] %vm1337, %v1336
        %s1348 = sand.u32 %s183, 1
        %s1349 = sand.u32 %s183, 1
        %s1350 = smul.addr %s1349, 80
        %s1351 = scalar_lea.vmem [#allocation2], %s1350
        // Predicated region
        $region49: #{bias_predictor_forward.1} parent=47 // pred_check
          %p1352 = pneg %p193
        $region50: #{bias_predictor_forward.1} parent=47 // pred_check_branch
          %1354 = sbr.rel (%p1352) target = $region52
        $region51: #{bias_predictor_forward.1} parent=47 // pred_region
          %s1355 = smul.u32 10, %s18
          %s1356 = ssub.s32 38, %s1355
          %p1357 = scmp.lt.s32.totalorder %s1356, 10
          %s1358 = scalar_select %p1357, %s1356, 10
          %s1359 = smul.u32 128, %s1358
          %p1360 = scmp.ne.s32.totalorder 0, %s1359
          %s1361 = smul.addr %s1355, 8
          %s1362 = scalar_lea.vmem %s7, %s1361
          // Predicated region
          $region53: #{bias_predictor_forward.1} parent=51 // pred_check
            %p1363 = pneg %p1360
          $region54: #{bias_predictor_forward.1} parent=51 // pred_check_branch
            %1365 = sbr.rel (%p1363) target = $region56
          $region55: #{bias_predictor_forward.1} parent=51 // pred_region
            // Predicated region
            $region57: #{bias_predictor_forward.1} parent=55 // pred_check
              _
            $region58: #{bias_predictor_forward.1} parent=55 // pred_check_branch
              %1367 = sbr.rel (0) target = $region60
            $region59: #{bias_predictor_forward.1} parent=55 // pred_region
              // Predicated region
              $region79: #{bias_predictor_forward.1} parent=59 // pred_check
                _
              $region80: #{bias_predictor_forward.1} parent=59 // pred_check_branch
                %1435 = sbr.rel (0) target = $region82
              $region81: #{bias_predictor_forward.1} parent=59 // pred_region
                %s1436 = sdiv.u32.pop %s1358, 10
                %s1437 = srem.u32.pop %s1358, 10
                // While loop
                $region83: #{bias_predictor_forward.1} parent=81 // loop_pre_header
                  _
                $region84: #{bias_predictor_forward.1} parent=81 // loop_header
                  %s1439 = sphi 0, %s1441
                  %p1440 = scmp.ge.s32.totalorder %s1439, %s1436
                  %s1444 = sphi 0, %s1469
                  %s1445 = sphi %s1351, %s1472
                  %s1446 = sphi %s1362, %s1473
                $region85: #{bias_predictor_forward.1} parent=81 // loop_header_branch
                  %1443 = sbr.rel (%p1440) target = $region89
                $region86: #{bias_predictor_forward.1} parent=81 // loop_body
                  %v1447 = vld [vmem:[%s1445] sm:$0xff]
                  %1448 = vst [vmem:[%s1446] sm:$0xff] %v1447
                  %v1449 = vld [vmem:[%s1445 + $0x8] sm:$0xff]
                  %1450 = vst [vmem:[%s1446 + $0x8] sm:$0xff] %v1449
                  %v1451 = vld [vmem:[%s1445 + $0x10] sm:$0xff]
                  %1452 = vst [vmem:[%s1446 + $0x10] sm:$0xff] %v1451
                  %v1453 = vld [vmem:[%s1445 + $0x18] sm:$0xff]
                  %1454 = vst [vmem:[%s1446 + $0x18] sm:$0xff] %v1453
                  %v1455 = vld [vmem:[%s1445 + $0x20] sm:$0xff]
                  %1456 = vst [vmem:[%s1446 + $0x20] sm:$0xff] %v1455
                  %v1457 = vld [vmem:[%s1445 + $0x28] sm:$0xff]
                  %1458 = vst [vmem:[%s1446 + $0x28] sm:$0xff] %v1457
                  %v1459 = vld [vmem:[%s1445 + $0x30] sm:$0xff]
                  %1460 = vst [vmem:[%s1446 + $0x30] sm:$0xff] %v1459
                  %v1461 = vld [vmem:[%s1445 + $0x38] sm:$0xff]
                  %1462 = vst [vmem:[%s1446 + $0x38] sm:$0xff] %v1461
                  %v1463 = vld [vmem:[%s1445 + $0x40] sm:$0xff]
                  %1464 = vst [vmem:[%s1446 + $0x40] sm:$0xff] %v1463
                  %v1465 = vld [vmem:[%s1445 + $0x48] sm:$0xff]
                  %1466 = vst [vmem:[%s1446 + $0x48] sm:$0xff] %v1465
                  %s1467 = sadd.s32 1, %s1444
                  %p1468 = scmp.ge.s32.totalorder %s1467, %s1436
                  %s1469 = scalar_select %p1468, 0, %s1467
                  %s1470 = smul.u32 %s1469, 80
                  %s1471 = smul.u32 %s1469, 80
                  %s1472 = scalar_lea.vmem %s1351, %s1470 [#allocation2]
                  %s1473 = scalar_lea.vmem %s1362, %s1471
                $region87: #{bias_predictor_forward.1} parent=81 // loop_footer
                  %s1441 = sadd.s32 %s1439, 1
                $region88: #{bias_predictor_forward.1} parent=81 // loop_footer_branch
                  %1438 = sbr.rel target = $region84
                $region89: #{bias_predictor_forward.1} parent=81 // loop_exit
                  _
                %s1474 = sdiv.u32.pop %s1358, 10
                %s1475 = srem.u32.pop %s1358, 10
                %s1476 = smul.u32 %s1474, 10
                %s1477 = smul.u32 8, %s1476
                %s1478 = scalar_lea.vmem %s1351, %s1477 [#allocation2]
                %s1479 = smul.u32 8, %s1476
                %s1480 = scalar_lea.vmem %s1362, %s1479
                // While loop
                $region90: #{bias_predictor_forward.1} parent=81 // loop_pre_header
                  _
                $region91: #{bias_predictor_forward.1} parent=81 // loop_header
                  %s1482 = sphi 0, %s1484
                  %p1483 = scmp.ge.s32.totalorder %s1482, %s1475
                  %s1487 = sphi 0, %s1494
                  %s1488 = sphi %s1478, %s1497
                  %s1489 = sphi %s1480, %s1498
                $region92: #{bias_predictor_forward.1} parent=81 // loop_header_branch
                  %1486 = sbr.rel (%p1483) target = $region96
                $region93: #{bias_predictor_forward.1} parent=81 // loop_body
                  %v1490 = vld [vmem:[%s1488] sm:$0xff]
                  %1491 = vst [vmem:[%s1489] sm:$0xff] %v1490
                  %s1492 = sadd.s32 1, %s1487
                  %p1493 = scmp.ge.s32.totalorder %s1492, %s1475
                  %s1494 = scalar_select %p1493, 0, %s1492
                  %s1495 = smul.u32 %s1494, 8
                  %s1496 = smul.u32 %s1494, 8
                  %s1497 = scalar_lea.vmem %s1478, %s1495 [#allocation2]
                  %s1498 = scalar_lea.vmem %s1480, %s1496
                $region94: #{bias_predictor_forward.1} parent=81 // loop_footer
                  %s1484 = sadd.s32 %s1482, 1
                $region95: #{bias_predictor_forward.1} parent=81 // loop_footer_branch
                  %1481 = sbr.rel target = $region91
                $region96: #{bias_predictor_forward.1} parent=81 // loop_exit
                  _
              $region82: #{bias_predictor_forward.1} parent=59 // pred_fallthru
                _
              // Predicated region
              $region97: #{bias_predictor_forward.1} parent=59 // pred_check
                _
              $region98: #{bias_predictor_forward.1} parent=59 // pred_check_branch
                %1500 = sbr.rel target = $region100
              $region99: #{bias_predictor_forward.1} parent=59 // pred_region
                _
              $region100: #{bias_predictor_forward.1} parent=59 // pred_fallthru
                _
            $region60: #{bias_predictor_forward.1} parent=55 // pred_fallthru
              _
            // Predicated region
            $region61: #{bias_predictor_forward.1} parent=55 // pred_check
              _
            $region62: #{bias_predictor_forward.1} parent=55 // pred_check_branch
              %1369 = sbr.rel target = $region64
            $region63: #{bias_predictor_forward.1} parent=55 // pred_region
              %s1371 = sdiv.u32.pop %s1358, 10
              %s1372 = srem.u32.pop %s1358, 10
              // While loop
              $region65: #{bias_predictor_forward.1} parent=63 // loop_pre_header
                _
              $region66: #{bias_predictor_forward.1} parent=63 // loop_header
                %s1374 = sphi 0, %s1376
                %p1375 = scmp.ge.s32.totalorder %s1374, %s1371
                %s1379 = sphi 0, %s1404
                %s1380 = sphi %s1351, %s1407
                %s1381 = sphi %s1362, %s1408
              $region67: #{bias_predictor_forward.1} parent=63 // loop_header_branch
                %1378 = sbr.rel (%p1375) target = $region71
              $region68: #{bias_predictor_forward.1} parent=63 // loop_body
                %v1382 = vld [vmem:[%s1380] sm:$0xff]
                %1383 = vst [vmem:[%s1381] sm:$0xff] %v1382
                %v1384 = vld [vmem:[%s1380 + $0x8] sm:$0xff]
                %1385 = vst [vmem:[%s1381 + $0x8] sm:$0xff] %v1384
                %v1386 = vld [vmem:[%s1380 + $0x10] sm:$0xff]
                %1387 = vst [vmem:[%s1381 + $0x10] sm:$0xff] %v1386
                %v1388 = vld [vmem:[%s1380 + $0x18] sm:$0xff]
                %1389 = vst [vmem:[%s1381 + $0x18] sm:$0xff] %v1388
                %v1390 = vld [vmem:[%s1380 + $0x20] sm:$0xff]
                %1391 = vst [vmem:[%s1381 + $0x20] sm:$0xff] %v1390
                %v1392 = vld [vmem:[%s1380 + $0x28] sm:$0xff]
                %1393 = vst [vmem:[%s1381 + $0x28] sm:$0xff] %v1392
                %v1394 = vld [vmem:[%s1380 + $0x30] sm:$0xff]
                %1395 = vst [vmem:[%s1381 + $0x30] sm:$0xff] %v1394
                %v1396 = vld [vmem:[%s1380 + $0x38] sm:$0xff]
                %1397 = vst [vmem:[%s1381 + $0x38] sm:$0xff] %v1396
                %v1398 = vld [vmem:[%s1380 + $0x40] sm:$0xff]
                %1399 = vst [vmem:[%s1381 + $0x40] sm:$0xff] %v1398
                %v1400 = vld [vmem:[%s1380 + $0x48] sm:$0xff]
                %1401 = vst [vmem:[%s1381 + $0x48] sm:$0xff] %v1400
                %s1402 = sadd.s32 1, %s1379
                %p1403 = scmp.ge.s32.totalorder %s1402, %s1371
                %s1404 = scalar_select %p1403, 0, %s1402
                %s1405 = smul.u32 %s1404, 80
                %s1406 = smul.u32 %s1404, 80
                %s1407 = scalar_lea.vmem %s1351, %s1405 [#allocation2]
                %s1408 = scalar_lea.vmem %s1362, %s1406
              $region69: #{bias_predictor_forward.1} parent=63 // loop_footer
                %s1376 = sadd.s32 %s1374, 1
              $region70: #{bias_predictor_forward.1} parent=63 // loop_footer_branch
                %1373 = sbr.rel target = $region66
              $region71: #{bias_predictor_forward.1} parent=63 // loop_exit
                _
              %s1409 = sdiv.u32.pop %s1358, 10
              %s1410 = srem.u32.pop %s1358, 10
              %s1411 = smul.u32 %s1409, 10
              %s1412 = smul.u32 8, %s1411
              %s1413 = scalar_lea.vmem %s1351, %s1412 [#allocation2]
              %s1414 = smul.u32 8, %s1411
              %s1415 = scalar_lea.vmem %s1362, %s1414
              // While loop
              $region72: #{bias_predictor_forward.1} parent=63 // loop_pre_header
                _
              $region73: #{bias_predictor_forward.1} parent=63 // loop_header
                %s1417 = sphi 0, %s1419
                %p1418 = scmp.ge.s32.totalorder %s1417, %s1410
                %s1422 = sphi 0, %s1429
                %s1423 = sphi %s1413, %s1432
                %s1424 = sphi %s1415, %s1433
              $region74: #{bias_predictor_forward.1} parent=63 // loop_header_branch
                %1421 = sbr.rel (%p1418) target = $region78
              $region75: #{bias_predictor_forward.1} parent=63 // loop_body
                %v1425 = vld [vmem:[%s1423] sm:$0xff]
                %1426 = vst [vmem:[%s1424] sm:$0xff] %v1425
                %s1427 = sadd.s32 1, %s1422
                %p1428 = scmp.ge.s32.totalorder %s1427, %s1410
                %s1429 = scalar_select %p1428, 0, %s1427
                %s1430 = smul.u32 %s1429, 8
                %s1431 = smul.u32 %s1429, 8
                %s1432 = scalar_lea.vmem %s1413, %s1430 [#allocation2]
                %s1433 = scalar_lea.vmem %s1415, %s1431
              $region76: #{bias_predictor_forward.1} parent=63 // loop_footer
                %s1419 = sadd.s32 %s1417, 1
              $region77: #{bias_predictor_forward.1} parent=63 // loop_footer_branch
                %1416 = sbr.rel target = $region73
              $region78: #{bias_predictor_forward.1} parent=63 // loop_exit
                _
            $region64: #{bias_predictor_forward.1} parent=55 // pred_fallthru
              _
          $region56: #{bias_predictor_forward.1} parent=51 // pred_fallthru
            _
          %1501 = vnop
        $region52: #{bias_predictor_forward.1} parent=47 // pred_fallthru
          _
      $region48: #{bias_predictor_forward.1} parent=5 // pred_fallthru
        _
      %p1502 = scmp.le.s32.totalorder 2, %s13
      // Predicated region
      $region101: #{bias_predictor_forward.1} parent=5 // pred_check
        %p1503 = pneg %p1502
      $region102: #{bias_predictor_forward.1} parent=5 // pred_check_branch
        %1505 = sbr.rel (%p1503) target = $region104
      $region103: #{bias_predictor_forward.1} parent=5 // pred_region
        %s1506 = ssub.s32 %s13, 2
        // Predicated region
        $region105: #{bias_predictor_forward.1} parent=103 // pred_check
          %p1507 = pneg %p199
        $region106: #{bias_predictor_forward.1} parent=103 // pred_check_branch
          %1509 = sbr.rel (%p1507) target = $region108
        $region107: #{bias_predictor_forward.1} parent=103 // pred_region
          %s1510 = sand.u32 %s184, 1
          %s1511 = sand.u32 %s184, 1
          %s1512 = smul.addr %s1511, 80
          %s1513 = scalar_lea.vmem [#allocation2], %s1512
        $region108: #{bias_predictor_forward.1} parent=103 // pred_fallthru
          _
      $region104: #{bias_predictor_forward.1} parent=5 // pred_fallthru
        _
    $region6: #{bias_predictor_forward.1} parent=1 // loop_footer
      %s17 = sadd.s32 1, %s13
    $region7: #{bias_predictor_forward.1} parent=1 // loop_footer_branch
      %12 = sbr.rel target = $region3
    $region8: #{bias_predictor_forward.1} parent=1 // loop_exit
      _

</llo_original>
